<compile_context>
chip_gen: v6e
topology: v6e:2x2x1
jax: 0.10.0
libtpu: 0.0.40
codegen_flags: <defaults>
</compile_context>

<pallas_src>
import functools

import jax
import jax.numpy as jnp
import numpy as np
from jax.experimental import pallas as pl
from jax.experimental.pallas import tpu as pltpu


# ----------------------------- Pallas kernel ------------------------------ #
def _encoder_lstm2_kernel(x_ref, w0_ref, b0_ref, w1_ref, b1_ref,
                          h_out_ref, c_out_ref):
    """Fused 2-layer LSTM recurrence over the full sequence (single call).

    x_ref   : (T, B, E)      embedded inputs for all timesteps
    w0_ref  : (E + H, 4H)    layer-0 stacked weights [W_ih0^T ; W_hh0^T]
    b0_ref  : (1, 4H)        layer-0 bias (b_ih0 + b_hh0)
    w1_ref  : (2H, 4H)       layer-1 stacked weights [W_ih1^T ; W_hh1^T]
    b1_ref  : (1, 4H)        layer-1 bias (b_ih1 + b_hh1)
    h_out_ref : (2, B, H)    final hidden states per layer
    c_out_ref : (2, B, H)    final cell states per layer
    """
    T = x_ref.shape[0]
    B = x_ref.shape[1]
    H = h_out_ref.shape[2]
    G = 4 * H

    # Hoisted lane-id mask: the tanh ("g") band is lanes [2H, 3H) of the
    # packed 4H gate vector (PyTorch gate order i, f, g, o).
    lane = jax.lax.broadcasted_iota(jnp.int32, (B, G), 1)
    g_band = jnp.logical_and(lane >= 2 * H, lane < 3 * H)

    def lstm_cell(xh, w_ref, b_ref, c_prev):
        # Single fused matmul: [x_t, h_prev] @ [[W_ih^T],[W_hh^T]] + bias.
        gates = jnp.dot(xh, w_ref[...],
                        preferred_element_type=jnp.float32) + b_ref[...]
        # Nonlinearities in the lane-dense packed (B, 4H) layout.
        act = jnp.where(g_band, jnp.tanh(gates), jax.nn.sigmoid(gates))
        i_g = act[:, 0 * H:1 * H]
        f_g = act[:, 1 * H:2 * H]
        g_g = act[:, 2 * H:3 * H]
        o_g = act[:, 3 * H:4 * H]
        c_new = f_g * c_prev + i_g * g_g
        h_new = o_g * jnp.tanh(c_new)
        return h_new, c_new

    zeros = jnp.zeros((B, H), jnp.float32)

    def step(t, carry):
        h0, c0, h1, c1 = carry
        x_t = x_ref[t]                                        # (B, E)
        # Layer 0
        h0n, c0n = lstm_cell(jnp.concatenate([x_t, h0], axis=1),
                             w0_ref, b0_ref, c0)
        # Layer 1 (inter-layer dropout is identity in eval mode)
        h1n, c1n = lstm_cell(jnp.concatenate([h0n, h1], axis=1),
                             w1_ref, b1_ref, c1)
        return (h0n, c0n, h1n, c1n)

    h0, c0, h1, c1 = jax.lax.fori_loop(
        0, T, step, (zeros, zeros, zeros, zeros), unroll=True)

    h_out_ref[0] = h0
    h_out_ref[1] = h1
    c_out_ref[0] = c0
    c_out_ref[1] = c1


def encoder_lstm_pallas(emb, w0, b0, w1, b1):
    """Run the fused 2-layer LSTM encoder recurrence in one Pallas call.

    emb : (T, B, E) f32
    w0  : (E + H, 4H) f32   stacked [W_ih0^T ; W_hh0^T]
    b0  : (1, 4H)    f32    b_ih0 + b_hh0
    w1  : (2H, 4H)   f32    stacked [W_ih1^T ; W_hh1^T]
    b1  : (1, 4H)    f32    b_ih1 + b_hh1
    returns hidden (2, B, H), cell (2, B, H)
    """
    T, B, E = emb.shape
    H = w1.shape[0] // 2
    G = 4 * H

    hidden, cell = pl.pallas_call(
        _encoder_lstm2_kernel,
        out_shape=(
            jax.ShapeDtypeStruct((2, B, H), jnp.float32),
            jax.ShapeDtypeStruct((2, B, H), jnp.float32),
        ),
        grid_spec=pltpu.PrefetchScalarGridSpec(
            num_scalar_prefetch=0,
            grid=(1,),
            in_specs=[
                pl.BlockSpec((T, B, E), lambda i: (0, 0, 0)),
                pl.BlockSpec((E + H, G), lambda i: (0, 0)),
                pl.BlockSpec((1, G), lambda i: (0, 0)),
                pl.BlockSpec((2 * H, G), lambda i: (0, 0)),
                pl.BlockSpec((1, G), lambda i: (0, 0)),
            ],
            out_specs=[
                pl.BlockSpec((2, B, H), lambda i: (0, 0, 0)),
                pl.BlockSpec((2, B, H), lambda i: (0, 0, 0)),
            ],
        ),
        compiler_params=pltpu.CompilerParams(
            dimension_semantics=("arbitrary",)),
        # NOTE: at large H on v7x (64 MiB VMEM) the 4H weight dim would need
        # tiling / bf16; at these shapes everything (<100 KiB) fits trivially.
    )(emb, w0, b0, w1, b1)
    return hidden, cell


# ------------------------------- Encoder ---------------------------------- #
def init_encoder_params(key, input_size, embedding_size, hidden_size,
                        num_layers):
    """Deterministic parameter init with PyTorch-equivalent shapes."""
    params = {}
    k_emb, key = jax.random.split(key)
    params["embedding"] = jax.random.normal(
        k_emb, (input_size, embedding_size), jnp.float32)

    bound = 1.0 / np.sqrt(hidden_size)
    layers = []
    for layer in range(num_layers):
        in_dim = embedding_size if layer == 0 else hidden_size
        k1, k2, k3, k4, key = jax.random.split(key, 5)
        w_ih = jax.random.uniform(k1, (4 * hidden_size, in_dim),
                                  jnp.float32, -bound, bound)
        w_hh = jax.random.uniform(k2, (4 * hidden_size, hidden_size),
                                  jnp.float32, -bound, bound)
        b_ih = jax.random.uniform(k3, (4 * hidden_size,),
                                  jnp.float32, -bound, bound)
        b_hh = jax.random.uniform(k4, (4 * hidden_size,),
                                  jnp.float32, -bound, bound)
        layers.append({"w_ih": w_ih, "w_hh": w_hh, "b_ih": b_ih,
                       "b_hh": b_hh})
    params["lstm"] = layers
    return params


def prep_encoder_params(raw_params):
    """One-time (init-time) weight prep: transpose+stack weights, sum biases.

    gates = x @ W_ih^T + h @ W_hh^T + b_ih + b_hh
          = [x, h] @ [[W_ih^T],[W_hh^T]] + (b_ih + b_hh)
    """
    prepped = {"embedding": raw_params["embedding"], "lstm": []}
    for lp in raw_params["lstm"]:
        w = jnp.concatenate([lp["w_ih"].T, lp["w_hh"].T], axis=0)  # (in+H, 4H)
        b = (lp["b_ih"] + lp["b_hh"]).reshape(1, -1)               # (1, 4H)
        prepped["lstm"].append({"w": w, "b": b})
    return prepped


@jax.jit
def encoder_forward(prepped_params, x_tokens):
    """x_tokens: (T, B) int32.  Returns (hidden, cell): (num_layers, B, H)."""
    assert len(prepped_params["lstm"]) == 2, "fused kernel expects 2 layers"
    # Embedding lookup (glue). Dropout is identity in eval mode.
    # TODO(synk): nn.Dropout only acts in training mode; eval forward is identity.
    emb = jnp.take(prepped_params["embedding"], x_tokens, axis=0)
    emb = emb.astype(jnp.float32)                       # (T, B, E)

    l0, l1 = prepped_params["lstm"]
    hidden, cell = encoder_lstm_pallas(emb, l0["w"], l0["b"], l1["w"], l1["b"])
    return hidden, cell


# --------------------------- pure-JAX reference ---------------------------- #
def encoder_forward_ref(raw_params, x_tokens):
    emb = jnp.take(raw_params["embedding"], x_tokens, axis=0)
    T, B, _ = emb.shape
    H = raw_params["lstm"][0]["w_hh"].shape[1]

    inp = emb
    h_finals, c_finals = [], []
    for lp in raw_params["lstm"]:
        w_ih, w_hh = lp["w_ih"], lp["w_hh"]
        b = lp["b_ih"] + lp["b_hh"]

        def step(carry, x_t):
            h, c = carry
            gates = x_t @ w_ih.T + h @ w_hh.T + b
            i = jax.nn.sigmoid(gates[:, 0 * H:1 * H])
            f = jax.nn.sigmoid(gates[:, 1 * H:2 * H])
            g = jnp.tanh(gates[:, 2 * H:3 * H])
            o = jax.nn.sigmoid(gates[:, 3 * H:4 * H])
            c_new = f * c + i * g
            h_new = o * jnp.tanh(c_new)
            return (h_new, c_new), h_new

        init = (jnp.zeros((B, H), jnp.float32), jnp.zeros((B, H), jnp.float32))
        (h_f, c_f), out_seq = jax.lax.scan(step, init, inp)
        h_finals.append(h_f)
        c_finals.append(c_f)
        inp = out_seq
    return jnp.stack(h_finals), jnp.stack(c_finals)


# --------------------------------- main ------------------------------------ #
if __name__ == "__main__":
    # Small shapes consistent with the module's forward:
    #   x: (seq_len=8, batch=2) int token ids
    #   vocab=50, embedding=32, hidden=32, num_layers=2
    input_size = 50
    embedding_size = 32
    hidden_size = 32
    num_layers = 2
    seq_len, batch = 8, 2

    key = jax.random.PRNGKey(0)
    k_params, k_tokens = jax.random.split(key)
    raw_params = init_encoder_params(k_params, input_size, embedding_size,
                                     hidden_size, num_layers)
    params = prep_encoder_params(raw_params)   # init-time weight prep (hoisted)
    x_tokens = jax.random.randint(k_tokens, (seq_len, batch), 0, input_size,
                                  dtype=jnp.int32)

    hidden, cell = encoder_forward(params, x_tokens)
    hidden, cell = jax.block_until_ready((hidden, cell))

    h_ref, c_ref = encoder_forward_ref(raw_params, x_tokens)
    assert hidden.shape == (num_layers, batch, hidden_size)
    assert cell.shape == (num_layers, batch, hidden_size)
    np.testing.assert_allclose(np.asarray(hidden), np.asarray(h_ref),
                               rtol=1e-5, atol=1e-5)
    np.testing.assert_allclose(np.asarray(cell), np.asarray(c_ref),
                               rtol=1e-5, atol=1e-5)
    print("KERNEL_OK")
</pallas_src>

<mosaic_0001>
module attributes {stable_mosaic.version = 11 : i64} {
  func.func @_encoder_lstm2_kernel(%arg0: i32, %arg1: memref<8x2x32xf32, #tpu.memory_space<vmem>>, %arg2: memref<64x128xf32, #tpu.memory_space<vmem>>, %arg3: memref<1x128xf32, #tpu.memory_space<vmem>>, %arg4: memref<64x128xf32, #tpu.memory_space<vmem>>, %arg5: memref<1x128xf32, #tpu.memory_space<vmem>>, %arg6: memref<2x2x32xf32, #tpu.memory_space<vmem>>, %arg7: memref<2x2x32xf32, #tpu.memory_space<vmem>>) attributes {dimension_semantics = [#tpu.dimension_semantics<arbitrary>], iteration_bounds = array<i64: 1>, scalar_prefetch = 0 : i64, scratch_operands = 0 : i64, tpu.core_type = #tpu.core_type<tc>, window_params = [{pipeline_mode = #tpu.pipeline_mode<synchronous>, transform_indices = @transform_0, window_bounds = array<i64: 8, 2, 32>}, {pipeline_mode = #tpu.pipeline_mode<synchronous>, transform_indices = @transform_1, window_bounds = array<i64: 64, 128>}, {pipeline_mode = #tpu.pipeline_mode<synchronous>, transform_indices = @transform_2, window_bounds = array<i64: 1, 128>}, {pipeline_mode = #tpu.pipeline_mode<synchronous>, transform_indices = @transform_3, window_bounds = array<i64: 64, 128>}, {pipeline_mode = #tpu.pipeline_mode<synchronous>, transform_indices = @transform_4, window_bounds = array<i64: 1, 128>}, {pipeline_mode = #tpu.pipeline_mode<synchronous>, transform_indices = @transform_5, window_bounds = array<i64: 2, 2, 32>}, {pipeline_mode = #tpu.pipeline_mode<synchronous>, transform_indices = @transform_6, window_bounds = array<i64: 2, 2, 32>}]} {
    %0 = tpu.iota {dimensions = array<i32: 1>} : vector<2x128xi32>
    %c64_i32 = arith.constant 64 : i32
    %1 = vector.broadcast %c64_i32 : i32 to vector<2x128xi32>
    %2 = arith.cmpi sge, %0, %1 : vector<2x128xi32>
    %c96_i32 = arith.constant 96 : i32
    %3 = vector.broadcast %c96_i32 : i32 to vector<2x128xi32>
    %4 = arith.cmpi slt, %0, %3 : vector<2x128xi32>
    %5 = arith.andi %2, %4 : vector<2x128xi1>
    %cst = arith.constant 0.000000e+00 : f32
    %6 = vector.broadcast %cst : f32 to vector<2x32xf32>
    %c0_i32 = arith.constant 0 : i32
    %7 = arith.index_cast %c0_i32 : i32 to index
    %c0 = arith.constant 0 : index
    %c0_0 = arith.constant 0 : index
    %8 = vector.load %arg1[%7, %c0, %c0_0] : memref<8x2x32xf32, #tpu.memory_space<vmem>>, vector<1x2x32xf32>
    %9 = vector.shape_cast %8 : vector<1x2x32xf32> to vector<2x32xf32>
    %10 = tpu.concatenate %9, %6 in 1 : vector<2x32xf32>, vector<2x32xf32> -> vector<2x64xf32>
    %c0_1 = arith.constant 0 : index
    %c0_2 = arith.constant 0 : index
    %11 = vector.load %arg2[%c0_1, %c0_2] : memref<64x128xf32, #tpu.memory_space<vmem>>, vector<64x128xf32>
    %cst_3 = arith.constant dense<0.000000e+00> : vector<2x128xf32>
    %12 = tpu.matmul %10, %11, %cst_3 {dimension_numbers = #tpu.dot_dimension_numbers<[1], [0], [0], [1], [0, 0, 1, 1], [], []>} : vector<2x64xf32>, vector<64x128xf32>, vector<2x128xf32> -> vector<2x128xf32>
    %c0_4 = arith.constant 0 : index
    %c0_5 = arith.constant 0 : index
    %13 = vector.load %arg3[%c0_4, %c0_5] : memref<1x128xf32, #tpu.memory_space<vmem>>, vector<1x128xf32>
    %14 = vector.broadcast %13 : vector<1x128xf32> to vector<2x128xf32>
    %15 = arith.addf %12, %14 : vector<2x128xf32>
    %16 = math.tanh %15 : vector<2x128xf32>
    %17 = arith.negf %15 : vector<2x128xf32>
    %18 = math.exp %17 : vector<2x128xf32>
    %cst_6 = arith.constant 1.000000e+00 : f32
    %19 = vector.broadcast %cst_6 : f32 to vector<2x128xf32>
    %20 = arith.addf %19, %18 : vector<2x128xf32>
    %21 = arith.divf %19, %20 : vector<2x128xf32>
    %22 = arith.select %5, %16, %21 : vector<2x128xi1>, vector<2x128xf32>
    %23 = vector.extract_strided_slice %22 {offsets = [0, 0], sizes = [2, 32], strides = [1, 1]} : vector<2x128xf32> to vector<2x32xf32>
    %24 = vector.extract_strided_slice %22 {offsets = [0, 32], sizes = [2, 32], strides = [1, 1]} : vector<2x128xf32> to vector<2x32xf32>
    %25 = vector.extract_strided_slice %22 {offsets = [0, 64], sizes = [2, 32], strides = [1, 1]} : vector<2x128xf32> to vector<2x32xf32>
    %26 = vector.extract_strided_slice %22 {offsets = [0, 96], sizes = [2, 32], strides = [1, 1]} : vector<2x128xf32> to vector<2x32xf32>
    %27 = arith.mulf %24, %6 : vector<2x32xf32>
    %28 = arith.mulf %23, %25 : vector<2x32xf32>
    %29 = arith.addf %27, %28 : vector<2x32xf32>
    %30 = math.tanh %29 : vector<2x32xf32>
    %31 = arith.mulf %26, %30 : vector<2x32xf32>
    %32 = tpu.concatenate %31, %6 in 1 : vector<2x32xf32>, vector<2x32xf32> -> vector<2x64xf32>
    %c0_7 = arith.constant 0 : index
    %c0_8 = arith.constant 0 : index
    %33 = vector.load %arg4[%c0_7, %c0_8] : memref<64x128xf32, #tpu.memory_space<vmem>>, vector<64x128xf32>
    %cst_9 = arith.constant dense<0.000000e+00> : vector<2x128xf32>
    %34 = tpu.matmul %32, %33, %cst_9 {dimension_numbers = #tpu.dot_dimension_numbers<[1], [0], [0], [1], [0, 0, 1, 1], [], []>} : vector<2x64xf32>, vector<64x128xf32>, vector<2x128xf32> -> vector<2x128xf32>
    %c0_10 = arith.constant 0 : index
    %c0_11 = arith.constant 0 : index
    %35 = vector.load %arg5[%c0_10, %c0_11] : memref<1x128xf32, #tpu.memory_space<vmem>>, vector<1x128xf32>
    %36 = vector.broadcast %35 : vector<1x128xf32> to vector<2x128xf32>
    %37 = arith.addf %34, %36 : vector<2x128xf32>
    %38 = math.tanh %37 : vector<2x128xf32>
    %39 = arith.negf %37 : vector<2x128xf32>
    %40 = math.exp %39 : vector<2x128xf32>
    %cst_12 = arith.constant 1.000000e+00 : f32
    %41 = vector.broadcast %cst_12 : f32 to vector<2x128xf32>
    %42 = arith.addf %41, %40 : vector<2x128xf32>
    %43 = arith.divf %41, %42 : vector<2x128xf32>
    %44 = arith.select %5, %38, %43 : vector<2x128xi1>, vector<2x128xf32>
    %45 = vector.extract_strided_slice %44 {offsets = [0, 0], sizes = [2, 32], strides = [1, 1]} : vector<2x128xf32> to vector<2x32xf32>
    %46 = vector.extract_strided_slice %44 {offsets = [0, 32], sizes = [2, 32], strides = [1, 1]} : vector<2x128xf32> to vector<2x32xf32>
    %47 = vector.extract_strided_slice %44 {offsets = [0, 64], sizes = [2, 32], strides = [1, 1]} : vector<2x128xf32> to vector<2x32xf32>
    %48 = vector.extract_strided_slice %44 {offsets = [0, 96], sizes = [2, 32], strides = [1, 1]} : vector<2x128xf32> to vector<2x32xf32>
    %49 = arith.mulf %46, %6 : vector<2x32xf32>
    %50 = arith.mulf %45, %47 : vector<2x32xf32>
    %51 = arith.addf %49, %50 : vector<2x32xf32>
    %52 = math.tanh %51 : vector<2x32xf32>
    %53 = arith.mulf %48, %52 : vector<2x32xf32>
    %c1_i32 = arith.constant 1 : i32
    %54 = arith.index_cast %c1_i32 : i32 to index
    %c0_13 = arith.constant 0 : index
    %c0_14 = arith.constant 0 : index
    %55 = vector.load %arg1[%54, %c0_13, %c0_14] : memref<8x2x32xf32, #tpu.memory_space<vmem>>, vector<1x2x32xf32>
    %56 = vector.shape_cast %55 : vector<1x2x32xf32> to vector<2x32xf32>
    %57 = tpu.concatenate %56, %31 in 1 : vector<2x32xf32>, vector<2x32xf32> -> vector<2x64xf32>
    %c0_15 = arith.constant 0 : index
    %c0_16 = arith.constant 0 : index
    %58 = vector.load %arg2[%c0_15, %c0_16] : memref<64x128xf32, #tpu.memory_space<vmem>>, vector<64x128xf32>
    %cst_17 = arith.constant dense<0.000000e+00> : vector<2x128xf32>
    %59 = tpu.matmul %57, %58, %cst_17 {dimension_numbers = #tpu.dot_dimension_numbers<[1], [0], [0], [1], [0, 0, 1, 1], [], []>} : vector<2x64xf32>, vector<64x128xf32>, vector<2x128xf32> -> vector<2x128xf32>
    %c0_18 = arith.constant 0 : index
    %c0_19 = arith.constant 0 : index
    %60 = vector.load %arg3[%c0_18, %c0_19] : memref<1x128xf32, #tpu.memory_space<vmem>>, vector<1x128xf32>
    %61 = vector.broadcast %60 : vector<1x128xf32> to vector<2x128xf32>
    %62 = arith.addf %59, %61 : vector<2x128xf32>
    %63 = math.tanh %62 : vector<2x128xf32>
    %64 = arith.negf %62 : vector<2x128xf32>
    %65 = math.exp %64 : vector<2x128xf32>
    %cst_20 = arith.constant 1.000000e+00 : f32
    %66 = vector.broadcast %cst_20 : f32 to vector<2x128xf32>
    %67 = arith.addf %66, %65 : vector<2x128xf32>
    %68 = arith.divf %66, %67 : vector<2x128xf32>
    %69 = arith.select %5, %63, %68 : vector<2x128xi1>, vector<2x128xf32>
    %70 = vector.extract_strided_slice %69 {offsets = [0, 0], sizes = [2, 32], strides = [1, 1]} : vector<2x128xf32> to vector<2x32xf32>
    %71 = vector.extract_strided_slice %69 {offsets = [0, 32], sizes = [2, 32], strides = [1, 1]} : vector<2x128xf32> to vector<2x32xf32>
    %72 = vector.extract_strided_slice %69 {offsets = [0, 64], sizes = [2, 32], strides = [1, 1]} : vector<2x128xf32> to vector<2x32xf32>
    %73 = vector.extract_strided_slice %69 {offsets = [0, 96], sizes = [2, 32], strides = [1, 1]} : vector<2x128xf32> to vector<2x32xf32>
    %74 = arith.mulf %71, %29 : vector<2x32xf32>
    %75 = arith.mulf %70, %72 : vector<2x32xf32>
    %76 = arith.addf %74, %75 : vector<2x32xf32>
    %77 = math.tanh %76 : vector<2x32xf32>
    %78 = arith.mulf %73, %77 : vector<2x32xf32>
    %79 = tpu.concatenate %78, %53 in 1 : vector<2x32xf32>, vector<2x32xf32> -> vector<2x64xf32>
    %c0_21 = arith.constant 0 : index
    %c0_22 = arith.constant 0 : index
    %80 = vector.load %arg4[%c0_21, %c0_22] : memref<64x128xf32, #tpu.memory_space<vmem>>, vector<64x128xf32>
    %cst_23 = arith.constant dense<0.000000e+00> : vector<2x128xf32>
    %81 = tpu.matmul %79, %80, %cst_23 {dimension_numbers = #tpu.dot_dimension_numbers<[1], [0], [0], [1], [0, 0, 1, 1], [], []>} : vector<2x64xf32>, vector<64x128xf32>, vector<2x128xf32> -> vector<2x128xf32>
    %c0_24 = arith.constant 0 : index
    %c0_25 = arith.constant 0 : index
    %82 = vector.load %arg5[%c0_24, %c0_25] : memref<1x128xf32, #tpu.memory_space<vmem>>, vector<1x128xf32>
    %83 = vector.broadcast %82 : vector<1x128xf32> to vector<2x128xf32>
    %84 = arith.addf %81, %83 : vector<2x128xf32>
    %85 = math.tanh %84 : vector<2x128xf32>
    %86 = arith.negf %84 : vector<2x128xf32>
    %87 = math.exp %86 : vector<2x128xf32>
    %cst_26 = arith.constant 1.000000e+00 : f32
    %88 = vector.broadcast %cst_26 : f32 to vector<2x128xf32>
    %89 = arith.addf %88, %87 : vector<2x128xf32>
    %90 = arith.divf %88, %89 : vector<2x128xf32>
    %91 = arith.select %5, %85, %90 : vector<2x128xi1>, vector<2x128xf32>
    %92 = vector.extract_strided_slice %91 {offsets = [0, 0], sizes = [2, 32], strides = [1, 1]} : vector<2x128xf32> to vector<2x32xf32>
    %93 = vector.extract_strided_slice %91 {offsets = [0, 32], sizes = [2, 32], strides = [1, 1]} : vector<2x128xf32> to vector<2x32xf32>
    %94 = vector.extract_strided_slice %91 {offsets = [0, 64], sizes = [2, 32], strides = [1, 1]} : vector<2x128xf32> to vector<2x32xf32>
    %95 = vector.extract_strided_slice %91 {offsets = [0, 96], sizes = [2, 32], strides = [1, 1]} : vector<2x128xf32> to vector<2x32xf32>
    %96 = arith.mulf %93, %51 : vector<2x32xf32>
    %97 = arith.mulf %92, %94 : vector<2x32xf32>
    %98 = arith.addf %96, %97 : vector<2x32xf32>
    %99 = math.tanh %98 : vector<2x32xf32>
    %100 = arith.mulf %95, %99 : vector<2x32xf32>
    %c2_i32 = arith.constant 2 : i32
    %101 = arith.index_cast %c2_i32 : i32 to index
    %c0_27 = arith.constant 0 : index
    %c0_28 = arith.constant 0 : index
    %102 = vector.load %arg1[%101, %c0_27, %c0_28] : memref<8x2x32xf32, #tpu.memory_space<vmem>>, vector<1x2x32xf32>
    %103 = vector.shape_cast %102 : vector<1x2x32xf32> to vector<2x32xf32>
    %104 = tpu.concatenate %103, %78 in 1 : vector<2x32xf32>, vector<2x32xf32> -> vector<2x64xf32>
    %c0_29 = arith.constant 0 : index
    %c0_30 = arith.constant 0 : index
    %105 = vector.load %arg2[%c0_29, %c0_30] : memref<64x128xf32, #tpu.memory_space<vmem>>, vector<64x128xf32>
    %cst_31 = arith.constant dense<0.000000e+00> : vector<2x128xf32>
    %106 = tpu.matmul %104, %105, %cst_31 {dimension_numbers = #tpu.dot_dimension_numbers<[1], [0], [0], [1], [0, 0, 1, 1], [], []>} : vector<2x64xf32>, vector<64x128xf32>, vector<2x128xf32> -> vector<2x128xf32>
    %c0_32 = arith.constant 0 : index
    %c0_33 = arith.constant 0 : index
    %107 = vector.load %arg3[%c0_32, %c0_33] : memref<1x128xf32, #tpu.memory_space<vmem>>, vector<1x128xf32>
    %108 = vector.broadcast %107 : vector<1x128xf32> to vector<2x128xf32>
    %109 = arith.addf %106, %108 : vector<2x128xf32>
    %110 = math.tanh %109 : vector<2x128xf32>
    %111 = arith.negf %109 : vector<2x128xf32>
    %112 = math.exp %111 : vector<2x128xf32>
    %cst_34 = arith.constant 1.000000e+00 : f32
    %113 = vector.broadcast %cst_34 : f32 to vector<2x128xf32>
    %114 = arith.addf %113, %112 : vector<2x128xf32>
    %115 = arith.divf %113, %114 : vector<2x128xf32>
    %116 = arith.select %5, %110, %115 : vector<2x128xi1>, vector<2x128xf32>
    %117 = vector.extract_strided_slice %116 {offsets = [0, 0], sizes = [2, 32], strides = [1, 1]} : vector<2x128xf32> to vector<2x32xf32>
    %118 = vector.extract_strided_slice %116 {offsets = [0, 32], sizes = [2, 32], strides = [1, 1]} : vector<2x128xf32> to vector<2x32xf32>
    %119 = vector.extract_strided_slice %116 {offsets = [0, 64], sizes = [2, 32], strides = [1, 1]} : vector<2x128xf32> to vector<2x32xf32>
    %120 = vector.extract_strided_slice %116 {offsets = [0, 96], sizes = [2, 32], strides = [1, 1]} : vector<2x128xf32> to vector<2x32xf32>
    %121 = arith.mulf %118, %76 : vector<2x32xf32>
    %122 = arith.mulf %117, %119 : vector<2x32xf32>
    %123 = arith.addf %121, %122 : vector<2x32xf32>
    %124 = math.tanh %123 : vector<2x32xf32>
    %125 = arith.mulf %120, %124 : vector<2x32xf32>
    %126 = tpu.concatenate %125, %100 in 1 : vector<2x32xf32>, vector<2x32xf32> -> vector<2x64xf32>
    %c0_35 = arith.constant 0 : index
    %c0_36 = arith.constant 0 : index
    %127 = vector.load %arg4[%c0_35, %c0_36] : memref<64x128xf32, #tpu.memory_space<vmem>>, vector<64x128xf32>
    %cst_37 = arith.constant dense<0.000000e+00> : vector<2x128xf32>
    %128 = tpu.matmul %126, %127, %cst_37 {dimension_numbers = #tpu.dot_dimension_numbers<[1], [0], [0], [1], [0, 0, 1, 1], [], []>} : vector<2x64xf32>, vector<64x128xf32>, vector<2x128xf32> -> vector<2x128xf32>
    %c0_38 = arith.constant 0 : index
    %c0_39 = arith.constant 0 : index
    %129 = vector.load %arg5[%c0_38, %c0_39] : memref<1x128xf32, #tpu.memory_space<vmem>>, vector<1x128xf32>
    %130 = vector.broadcast %129 : vector<1x128xf32> to vector<2x128xf32>
    %131 = arith.addf %128, %130 : vector<2x128xf32>
    %132 = math.tanh %131 : vector<2x128xf32>
    %133 = arith.negf %131 : vector<2x128xf32>
    %134 = math.exp %133 : vector<2x128xf32>
    %cst_40 = arith.constant 1.000000e+00 : f32
    %135 = vector.broadcast %cst_40 : f32 to vector<2x128xf32>
    %136 = arith.addf %135, %134 : vector<2x128xf32>
    %137 = arith.divf %135, %136 : vector<2x128xf32>
    %138 = arith.select %5, %132, %137 : vector<2x128xi1>, vector<2x128xf32>
    %139 = vector.extract_strided_slice %138 {offsets = [0, 0], sizes = [2, 32], strides = [1, 1]} : vector<2x128xf32> to vector<2x32xf32>
    %140 = vector.extract_strided_slice %138 {offsets = [0, 32], sizes = [2, 32], strides = [1, 1]} : vector<2x128xf32> to vector<2x32xf32>
    %141 = vector.extract_strided_slice %138 {offsets = [0, 64], sizes = [2, 32], strides = [1, 1]} : vector<2x128xf32> to vector<2x32xf32>
    %142 = vector.extract_strided_slice %138 {offsets = [0, 96], sizes = [2, 32], strides = [1, 1]} : vector<2x128xf32> to vector<2x32xf32>
    %143 = arith.mulf %140, %98 : vector<2x32xf32>
    %144 = arith.mulf %139, %141 : vector<2x32xf32>
    %145 = arith.addf %143, %144 : vector<2x32xf32>
    %146 = math.tanh %145 : vector<2x32xf32>
    %147 = arith.mulf %142, %146 : vector<2x32xf32>
    %c3_i32 = arith.constant 3 : i32
    %148 = arith.index_cast %c3_i32 : i32 to index
    %c0_41 = arith.constant 0 : index
    %c0_42 = arith.constant 0 : index
    %149 = vector.load %arg1[%148, %c0_41, %c0_42] : memref<8x2x32xf32, #tpu.memory_space<vmem>>, vector<1x2x32xf32>
    %150 = vector.shape_cast %149 : vector<1x2x32xf32> to vector<2x32xf32>
    %151 = tpu.concatenate %150, %125 in 1 : vector<2x32xf32>, vector<2x32xf32> -> vector<2x64xf32>
    %c0_43 = arith.constant 0 : index
    %c0_44 = arith.constant 0 : index
    %152 = vector.load %arg2[%c0_43, %c0_44] : memref<64x128xf32, #tpu.memory_space<vmem>>, vector<64x128xf32>
    %cst_45 = arith.constant dense<0.000000e+00> : vector<2x128xf32>
    %153 = tpu.matmul %151, %152, %cst_45 {dimension_numbers = #tpu.dot_dimension_numbers<[1], [0], [0], [1], [0, 0, 1, 1], [], []>} : vector<2x64xf32>, vector<64x128xf32>, vector<2x128xf32> -> vector<2x128xf32>
    %c0_46 = arith.constant 0 : index
    %c0_47 = arith.constant 0 : index
    %154 = vector.load %arg3[%c0_46, %c0_47] : memref<1x128xf32, #tpu.memory_space<vmem>>, vector<1x128xf32>
    %155 = vector.broadcast %154 : vector<1x128xf32> to vector<2x128xf32>
    %156 = arith.addf %153, %155 : vector<2x128xf32>
    %157 = math.tanh %156 : vector<2x128xf32>
    %158 = arith.negf %156 : vector<2x128xf32>
    %159 = math.exp %158 : vector<2x128xf32>
    %cst_48 = arith.constant 1.000000e+00 : f32
    %160 = vector.broadcast %cst_48 : f32 to vector<2x128xf32>
    %161 = arith.addf %160, %159 : vector<2x128xf32>
    %162 = arith.divf %160, %161 : vector<2x128xf32>
    %163 = arith.select %5, %157, %162 : vector<2x128xi1>, vector<2x128xf32>
    %164 = vector.extract_strided_slice %163 {offsets = [0, 0], sizes = [2, 32], strides = [1, 1]} : vector<2x128xf32> to vector<2x32xf32>
    %165 = vector.extract_strided_slice %163 {offsets = [0, 32], sizes = [2, 32], strides = [1, 1]} : vector<2x128xf32> to vector<2x32xf32>
    %166 = vector.extract_strided_slice %163 {offsets = [0, 64], sizes = [2, 32], strides = [1, 1]} : vector<2x128xf32> to vector<2x32xf32>
    %167 = vector.extract_strided_slice %163 {offsets = [0, 96], sizes = [2, 32], strides = [1, 1]} : vector<2x128xf32> to vector<2x32xf32>
    %168 = arith.mulf %165, %123 : vector<2x32xf32>
    %169 = arith.mulf %164, %166 : vector<2x32xf32>
    %170 = arith.addf %168, %169 : vector<2x32xf32>
    %171 = math.tanh %170 : vector<2x32xf32>
    %172 = arith.mulf %167, %171 : vector<2x32xf32>
    %173 = tpu.concatenate %172, %147 in 1 : vector<2x32xf32>, vector<2x32xf32> -> vector<2x64xf32>
    %c0_49 = arith.constant 0 : index
    %c0_50 = arith.constant 0 : index
    %174 = vector.load %arg4[%c0_49, %c0_50] : memref<64x128xf32, #tpu.memory_space<vmem>>, vector<64x128xf32>
    %cst_51 = arith.constant dense<0.000000e+00> : vector<2x128xf32>
    %175 = tpu.matmul %173, %174, %cst_51 {dimension_numbers = #tpu.dot_dimension_numbers<[1], [0], [0], [1], [0, 0, 1, 1], [], []>} : vector<2x64xf32>, vector<64x128xf32>, vector<2x128xf32> -> vector<2x128xf32>
    %c0_52 = arith.constant 0 : index
    %c0_53 = arith.constant 0 : index
    %176 = vector.load %arg5[%c0_52, %c0_53] : memref<1x128xf32, #tpu.memory_space<vmem>>, vector<1x128xf32>
    %177 = vector.broadcast %176 : vector<1x128xf32> to vector<2x128xf32>
    %178 = arith.addf %175, %177 : vector<2x128xf32>
    %179 = math.tanh %178 : vector<2x128xf32>
    %180 = arith.negf %178 : vector<2x128xf32>
    %181 = math.exp %180 : vector<2x128xf32>
    %cst_54 = arith.constant 1.000000e+00 : f32
    %182 = vector.broadcast %cst_54 : f32 to vector<2x128xf32>
    %183 = arith.addf %182, %181 : vector<2x128xf32>
    %184 = arith.divf %182, %183 : vector<2x128xf32>
    %185 = arith.select %5, %179, %184 : vector<2x128xi1>, vector<2x128xf32>
    %186 = vector.extract_strided_slice %185 {offsets = [0, 0], sizes = [2, 32], strides = [1, 1]} : vector<2x128xf32> to vector<2x32xf32>
    %187 = vector.extract_strided_slice %185 {offsets = [0, 32], sizes = [2, 32], strides = [1, 1]} : vector<2x128xf32> to vector<2x32xf32>
    %188 = vector.extract_strided_slice %185 {offsets = [0, 64], sizes = [2, 32], strides = [1, 1]} : vector<2x128xf32> to vector<2x32xf32>
    %189 = vector.extract_strided_slice %185 {offsets = [0, 96], sizes = [2, 32], strides = [1, 1]} : vector<2x128xf32> to vector<2x32xf32>
    %190 = arith.mulf %187, %145 : vector<2x32xf32>
    %191 = arith.mulf %186, %188 : vector<2x32xf32>
    %192 = arith.addf %190, %191 : vector<2x32xf32>
    %193 = math.tanh %192 : vector<2x32xf32>
    %194 = arith.mulf %189, %193 : vector<2x32xf32>
    %c4_i32 = arith.constant 4 : i32
    %195 = arith.index_cast %c4_i32 : i32 to index
    %c0_55 = arith.constant 0 : index
    %c0_56 = arith.constant 0 : index
    %196 = vector.load %arg1[%195, %c0_55, %c0_56] : memref<8x2x32xf32, #tpu.memory_space<vmem>>, vector<1x2x32xf32>
    %197 = vector.shape_cast %196 : vector<1x2x32xf32> to vector<2x32xf32>
    %198 = tpu.concatenate %197, %172 in 1 : vector<2x32xf32>, vector<2x32xf32> -> vector<2x64xf32>
    %c0_57 = arith.constant 0 : index
    %c0_58 = arith.constant 0 : index
    %199 = vector.load %arg2[%c0_57, %c0_58] : memref<64x128xf32, #tpu.memory_space<vmem>>, vector<64x128xf32>
    %cst_59 = arith.constant dense<0.000000e+00> : vector<2x128xf32>
    %200 = tpu.matmul %198, %199, %cst_59 {dimension_numbers = #tpu.dot_dimension_numbers<[1], [0], [0], [1], [0, 0, 1, 1], [], []>} : vector<2x64xf32>, vector<64x128xf32>, vector<2x128xf32> -> vector<2x128xf32>
    %c0_60 = arith.constant 0 : index
    %c0_61 = arith.constant 0 : index
    %201 = vector.load %arg3[%c0_60, %c0_61] : memref<1x128xf32, #tpu.memory_space<vmem>>, vector<1x128xf32>
    %202 = vector.broadcast %201 : vector<1x128xf32> to vector<2x128xf32>
    %203 = arith.addf %200, %202 : vector<2x128xf32>
    %204 = math.tanh %203 : vector<2x128xf32>
    %205 = arith.negf %203 : vector<2x128xf32>
    %206 = math.exp %205 : vector<2x128xf32>
    %cst_62 = arith.constant 1.000000e+00 : f32
    %207 = vector.broadcast %cst_62 : f32 to vector<2x128xf32>
    %208 = arith.addf %207, %206 : vector<2x128xf32>
    %209 = arith.divf %207, %208 : vector<2x128xf32>
    %210 = arith.select %5, %204, %209 : vector<2x128xi1>, vector<2x128xf32>
    %211 = vector.extract_strided_slice %210 {offsets = [0, 0], sizes = [2, 32], strides = [1, 1]} : vector<2x128xf32> to vector<2x32xf32>
    %212 = vector.extract_strided_slice %210 {offsets = [0, 32], sizes = [2, 32], strides = [1, 1]} : vector<2x128xf32> to vector<2x32xf32>
    %213 = vector.extract_strided_slice %210 {offsets = [0, 64], sizes = [2, 32], strides = [1, 1]} : vector<2x128xf32> to vector<2x32xf32>
    %214 = vector.extract_strided_slice %210 {offsets = [0, 96], sizes = [2, 32], strides = [1, 1]} : vector<2x128xf32> to vector<2x32xf32>
    %215 = arith.mulf %212, %170 : vector<2x32xf32>
    %216 = arith.mulf %211, %213 : vector<2x32xf32>
    %217 = arith.addf %215, %216 : vector<2x32xf32>
    %218 = math.tanh %217 : vector<2x32xf32>
    %219 = arith.mulf %214, %218 : vector<2x32xf32>
    %220 = tpu.concatenate %219, %194 in 1 : vector<2x32xf32>, vector<2x32xf32> -> vector<2x64xf32>
    %c0_63 = arith.constant 0 : index
    %c0_64 = arith.constant 0 : index
    %221 = vector.load %arg4[%c0_63, %c0_64] : memref<64x128xf32, #tpu.memory_space<vmem>>, vector<64x128xf32>
    %cst_65 = arith.constant dense<0.000000e+00> : vector<2x128xf32>
    %222 = tpu.matmul %220, %221, %cst_65 {dimension_numbers = #tpu.dot_dimension_numbers<[1], [0], [0], [1], [0, 0, 1, 1], [], []>} : vector<2x64xf32>, vector<64x128xf32>, vector<2x128xf32> -> vector<2x128xf32>
    %c0_66 = arith.constant 0 : index
    %c0_67 = arith.constant 0 : index
    %223 = vector.load %arg5[%c0_66, %c0_67] : memref<1x128xf32, #tpu.memory_space<vmem>>, vector<1x128xf32>
    %224 = vector.broadcast %223 : vector<1x128xf32> to vector<2x128xf32>
    %225 = arith.addf %222, %224 : vector<2x128xf32>
    %226 = math.tanh %225 : vector<2x128xf32>
    %227 = arith.negf %225 : vector<2x128xf32>
    %228 = math.exp %227 : vector<2x128xf32>
    %cst_68 = arith.constant 1.000000e+00 : f32
    %229 = vector.broadcast %cst_68 : f32 to vector<2x128xf32>
    %230 = arith.addf %229, %228 : vector<2x128xf32>
    %231 = arith.divf %229, %230 : vector<2x128xf32>
    %232 = arith.select %5, %226, %231 : vector<2x128xi1>, vector<2x128xf32>
    %233 = vector.extract_strided_slice %232 {offsets = [0, 0], sizes = [2, 32], strides = [1, 1]} : vector<2x128xf32> to vector<2x32xf32>
    %234 = vector.extract_strided_slice %232 {offsets = [0, 32], sizes = [2, 32], strides = [1, 1]} : vector<2x128xf32> to vector<2x32xf32>
    %235 = vector.extract_strided_slice %232 {offsets = [0, 64], sizes = [2, 32], strides = [1, 1]} : vector<2x128xf32> to vector<2x32xf32>
    %236 = vector.extract_strided_slice %232 {offsets = [0, 96], sizes = [2, 32], strides = [1, 1]} : vector<2x128xf32> to vector<2x32xf32>
    %237 = arith.mulf %234, %192 : vector<2x32xf32>
    %238 = arith.mulf %233, %235 : vector<2x32xf32>
    %239 = arith.addf %237, %238 : vector<2x32xf32>
    %240 = math.tanh %239 : vector<2x32xf32>
    %241 = arith.mulf %236, %240 : vector<2x32xf32>
    %c5_i32 = arith.constant 5 : i32
    %242 = arith.index_cast %c5_i32 : i32 to index
    %c0_69 = arith.constant 0 : index
    %c0_70 = arith.constant 0 : index
    %243 = vector.load %arg1[%242, %c0_69, %c0_70] : memref<8x2x32xf32, #tpu.memory_space<vmem>>, vector<1x2x32xf32>
    %244 = vector.shape_cast %243 : vector<1x2x32xf32> to vector<2x32xf32>
    %245 = tpu.concatenate %244, %219 in 1 : vector<2x32xf32>, vector<2x32xf32> -> vector<2x64xf32>
    %c0_71 = arith.constant 0 : index
    %c0_72 = arith.constant 0 : index
    %246 = vector.load %arg2[%c0_71, %c0_72] : memref<64x128xf32, #tpu.memory_space<vmem>>, vector<64x128xf32>
    %cst_73 = arith.constant dense<0.000000e+00> : vector<2x128xf32>
    %247 = tpu.matmul %245, %246, %cst_73 {dimension_numbers = #tpu.dot_dimension_numbers<[1], [0], [0], [1], [0, 0, 1, 1], [], []>} : vector<2x64xf32>, vector<64x128xf32>, vector<2x128xf32> -> vector<2x128xf32>
    %c0_74 = arith.constant 0 : index
    %c0_75 = arith.constant 0 : index
    %248 = vector.load %arg3[%c0_74, %c0_75] : memref<1x128xf32, #tpu.memory_space<vmem>>, vector<1x128xf32>
    %249 = vector.broadcast %248 : vector<1x128xf32> to vector<2x128xf32>
    %250 = arith.addf %247, %249 : vector<2x128xf32>
    %251 = math.tanh %250 : vector<2x128xf32>
    %252 = arith.negf %250 : vector<2x128xf32>
    %253 = math.exp %252 : vector<2x128xf32>
    %cst_76 = arith.constant 1.000000e+00 : f32
    %254 = vector.broadcast %cst_76 : f32 to vector<2x128xf32>
    %255 = arith.addf %254, %253 : vector<2x128xf32>
    %256 = arith.divf %254, %255 : vector<2x128xf32>
    %257 = arith.select %5, %251, %256 : vector<2x128xi1>, vector<2x128xf32>
    %258 = vector.extract_strided_slice %257 {offsets = [0, 0], sizes = [2, 32], strides = [1, 1]} : vector<2x128xf32> to vector<2x32xf32>
    %259 = vector.extract_strided_slice %257 {offsets = [0, 32], sizes = [2, 32], strides = [1, 1]} : vector<2x128xf32> to vector<2x32xf32>
    %260 = vector.extract_strided_slice %257 {offsets = [0, 64], sizes = [2, 32], strides = [1, 1]} : vector<2x128xf32> to vector<2x32xf32>
    %261 = vector.extract_strided_slice %257 {offsets = [0, 96], sizes = [2, 32], strides = [1, 1]} : vector<2x128xf32> to vector<2x32xf32>
    %262 = arith.mulf %259, %217 : vector<2x32xf32>
    %263 = arith.mulf %258, %260 : vector<2x32xf32>
    %264 = arith.addf %262, %263 : vector<2x32xf32>
    %265 = math.tanh %264 : vector<2x32xf32>
    %266 = arith.mulf %261, %265 : vector<2x32xf32>
    %267 = tpu.concatenate %266, %241 in 1 : vector<2x32xf32>, vector<2x32xf32> -> vector<2x64xf32>
    %c0_77 = arith.constant 0 : index
    %c0_78 = arith.constant 0 : index
    %268 = vector.load %arg4[%c0_77, %c0_78] : memref<64x128xf32, #tpu.memory_space<vmem>>, vector<64x128xf32>
    %cst_79 = arith.constant dense<0.000000e+00> : vector<2x128xf32>
    %269 = tpu.matmul %267, %268, %cst_79 {dimension_numbers = #tpu.dot_dimension_numbers<[1], [0], [0], [1], [0, 0, 1, 1], [], []>} : vector<2x64xf32>, vector<64x128xf32>, vector<2x128xf32> -> vector<2x128xf32>
    %c0_80 = arith.constant 0 : index
    %c0_81 = arith.constant 0 : index
    %270 = vector.load %arg5[%c0_80, %c0_81] : memref<1x128xf32, #tpu.memory_space<vmem>>, vector<1x128xf32>
    %271 = vector.broadcast %270 : vector<1x128xf32> to vector<2x128xf32>
    %272 = arith.addf %269, %271 : vector<2x128xf32>
    %273 = math.tanh %272 : vector<2x128xf32>
    %274 = arith.negf %272 : vector<2x128xf32>
    %275 = math.exp %274 : vector<2x128xf32>
    %cst_82 = arith.constant 1.000000e+00 : f32
    %276 = vector.broadcast %cst_82 : f32 to vector<2x128xf32>
    %277 = arith.addf %276, %275 : vector<2x128xf32>
    %278 = arith.divf %276, %277 : vector<2x128xf32>
    %279 = arith.select %5, %273, %278 : vector<2x128xi1>, vector<2x128xf32>
    %280 = vector.extract_strided_slice %279 {offsets = [0, 0], sizes = [2, 32], strides = [1, 1]} : vector<2x128xf32> to vector<2x32xf32>
    %281 = vector.extract_strided_slice %279 {offsets = [0, 32], sizes = [2, 32], strides = [1, 1]} : vector<2x128xf32> to vector<2x32xf32>
    %282 = vector.extract_strided_slice %279 {offsets = [0, 64], sizes = [2, 32], strides = [1, 1]} : vector<2x128xf32> to vector<2x32xf32>
    %283 = vector.extract_strided_slice %279 {offsets = [0, 96], sizes = [2, 32], strides = [1, 1]} : vector<2x128xf32> to vector<2x32xf32>
    %284 = arith.mulf %281, %239 : vector<2x32xf32>
    %285 = arith.mulf %280, %282 : vector<2x32xf32>
    %286 = arith.addf %284, %285 : vector<2x32xf32>
    %287 = math.tanh %286 : vector<2x32xf32>
    %288 = arith.mulf %283, %287 : vector<2x32xf32>
    %c6_i32 = arith.constant 6 : i32
    %289 = arith.index_cast %c6_i32 : i32 to index
    %c0_83 = arith.constant 0 : index
    %c0_84 = arith.constant 0 : index
    %290 = vector.load %arg1[%289, %c0_83, %c0_84] : memref<8x2x32xf32, #tpu.memory_space<vmem>>, vector<1x2x32xf32>
    %291 = vector.shape_cast %290 : vector<1x2x32xf32> to vector<2x32xf32>
    %292 = tpu.concatenate %291, %266 in 1 : vector<2x32xf32>, vector<2x32xf32> -> vector<2x64xf32>
    %c0_85 = arith.constant 0 : index
    %c0_86 = arith.constant 0 : index
    %293 = vector.load %arg2[%c0_85, %c0_86] : memref<64x128xf32, #tpu.memory_space<vmem>>, vector<64x128xf32>
    %cst_87 = arith.constant dense<0.000000e+00> : vector<2x128xf32>
    %294 = tpu.matmul %292, %293, %cst_87 {dimension_numbers = #tpu.dot_dimension_numbers<[1], [0], [0], [1], [0, 0, 1, 1], [], []>} : vector<2x64xf32>, vector<64x128xf32>, vector<2x128xf32> -> vector<2x128xf32>
    %c0_88 = arith.constant 0 : index
    %c0_89 = arith.constant 0 : index
    %295 = vector.load %arg3[%c0_88, %c0_89] : memref<1x128xf32, #tpu.memory_space<vmem>>, vector<1x128xf32>
    %296 = vector.broadcast %295 : vector<1x128xf32> to vector<2x128xf32>
    %297 = arith.addf %294, %296 : vector<2x128xf32>
    %298 = math.tanh %297 : vector<2x128xf32>
    %299 = arith.negf %297 : vector<2x128xf32>
    %300 = math.exp %299 : vector<2x128xf32>
    %cst_90 = arith.constant 1.000000e+00 : f32
    %301 = vector.broadcast %cst_90 : f32 to vector<2x128xf32>
    %302 = arith.addf %301, %300 : vector<2x128xf32>
    %303 = arith.divf %301, %302 : vector<2x128xf32>
    %304 = arith.select %5, %298, %303 : vector<2x128xi1>, vector<2x128xf32>
    %305 = vector.extract_strided_slice %304 {offsets = [0, 0], sizes = [2, 32], strides = [1, 1]} : vector<2x128xf32> to vector<2x32xf32>
    %306 = vector.extract_strided_slice %304 {offsets = [0, 32], sizes = [2, 32], strides = [1, 1]} : vector<2x128xf32> to vector<2x32xf32>
    %307 = vector.extract_strided_slice %304 {offsets = [0, 64], sizes = [2, 32], strides = [1, 1]} : vector<2x128xf32> to vector<2x32xf32>
    %308 = vector.extract_strided_slice %304 {offsets = [0, 96], sizes = [2, 32], strides = [1, 1]} : vector<2x128xf32> to vector<2x32xf32>
    %309 = arith.mulf %306, %264 : vector<2x32xf32>
    %310 = arith.mulf %305, %307 : vector<2x32xf32>
    %311 = arith.addf %309, %310 : vector<2x32xf32>
    %312 = math.tanh %311 : vector<2x32xf32>
    %313 = arith.mulf %308, %312 : vector<2x32xf32>
    %314 = tpu.concatenate %313, %288 in 1 : vector<2x32xf32>, vector<2x32xf32> -> vector<2x64xf32>
    %c0_91 = arith.constant 0 : index
    %c0_92 = arith.constant 0 : index
    %315 = vector.load %arg4[%c0_91, %c0_92] : memref<64x128xf32, #tpu.memory_space<vmem>>, vector<64x128xf32>
    %cst_93 = arith.constant dense<0.000000e+00> : vector<2x128xf32>
    %316 = tpu.matmul %314, %315, %cst_93 {dimension_numbers = #tpu.dot_dimension_numbers<[1], [0], [0], [1], [0, 0, 1, 1], [], []>} : vector<2x64xf32>, vector<64x128xf32>, vector<2x128xf32> -> vector<2x128xf32>
    %c0_94 = arith.constant 0 : index
    %c0_95 = arith.constant 0 : index
    %317 = vector.load %arg5[%c0_94, %c0_95] : memref<1x128xf32, #tpu.memory_space<vmem>>, vector<1x128xf32>
    %318 = vector.broadcast %317 : vector<1x128xf32> to vector<2x128xf32>
    %319 = arith.addf %316, %318 : vector<2x128xf32>
    %320 = math.tanh %319 : vector<2x128xf32>
    %321 = arith.negf %319 : vector<2x128xf32>
    %322 = math.exp %321 : vector<2x128xf32>
    %cst_96 = arith.constant 1.000000e+00 : f32
    %323 = vector.broadcast %cst_96 : f32 to vector<2x128xf32>
    %324 = arith.addf %323, %322 : vector<2x128xf32>
    %325 = arith.divf %323, %324 : vector<2x128xf32>
    %326 = arith.select %5, %320, %325 : vector<2x128xi1>, vector<2x128xf32>
    %327 = vector.extract_strided_slice %326 {offsets = [0, 0], sizes = [2, 32], strides = [1, 1]} : vector<2x128xf32> to vector<2x32xf32>
    %328 = vector.extract_strided_slice %326 {offsets = [0, 32], sizes = [2, 32], strides = [1, 1]} : vector<2x128xf32> to vector<2x32xf32>
    %329 = vector.extract_strided_slice %326 {offsets = [0, 64], sizes = [2, 32], strides = [1, 1]} : vector<2x128xf32> to vector<2x32xf32>
    %330 = vector.extract_strided_slice %326 {offsets = [0, 96], sizes = [2, 32], strides = [1, 1]} : vector<2x128xf32> to vector<2x32xf32>
    %331 = arith.mulf %328, %286 : vector<2x32xf32>
    %332 = arith.mulf %327, %329 : vector<2x32xf32>
    %333 = arith.addf %331, %332 : vector<2x32xf32>
    %334 = math.tanh %333 : vector<2x32xf32>
    %335 = arith.mulf %330, %334 : vector<2x32xf32>
    %c7_i32 = arith.constant 7 : i32
    %336 = arith.index_cast %c7_i32 : i32 to index
    %c0_97 = arith.constant 0 : index
    %c0_98 = arith.constant 0 : index
    %337 = vector.load %arg1[%336, %c0_97, %c0_98] : memref<8x2x32xf32, #tpu.memory_space<vmem>>, vector<1x2x32xf32>
    %338 = vector.shape_cast %337 : vector<1x2x32xf32> to vector<2x32xf32>
    %339 = tpu.concatenate %338, %313 in 1 : vector<2x32xf32>, vector<2x32xf32> -> vector<2x64xf32>
    %c0_99 = arith.constant 0 : index
    %c0_100 = arith.constant 0 : index
    %340 = vector.load %arg2[%c0_99, %c0_100] : memref<64x128xf32, #tpu.memory_space<vmem>>, vector<64x128xf32>
    %cst_101 = arith.constant dense<0.000000e+00> : vector<2x128xf32>
    %341 = tpu.matmul %339, %340, %cst_101 {dimension_numbers = #tpu.dot_dimension_numbers<[1], [0], [0], [1], [0, 0, 1, 1], [], []>} : vector<2x64xf32>, vector<64x128xf32>, vector<2x128xf32> -> vector<2x128xf32>
    %c0_102 = arith.constant 0 : index
    %c0_103 = arith.constant 0 : index
    %342 = vector.load %arg3[%c0_102, %c0_103] : memref<1x128xf32, #tpu.memory_space<vmem>>, vector<1x128xf32>
    %343 = vector.broadcast %342 : vector<1x128xf32> to vector<2x128xf32>
    %344 = arith.addf %341, %343 : vector<2x128xf32>
    %345 = math.tanh %344 : vector<2x128xf32>
    %346 = arith.negf %344 : vector<2x128xf32>
    %347 = math.exp %346 : vector<2x128xf32>
    %cst_104 = arith.constant 1.000000e+00 : f32
    %348 = vector.broadcast %cst_104 : f32 to vector<2x128xf32>
    %349 = arith.addf %348, %347 : vector<2x128xf32>
    %350 = arith.divf %348, %349 : vector<2x128xf32>
    %351 = arith.select %5, %345, %350 : vector<2x128xi1>, vector<2x128xf32>
    %352 = vector.extract_strided_slice %351 {offsets = [0, 0], sizes = [2, 32], strides = [1, 1]} : vector<2x128xf32> to vector<2x32xf32>
    %353 = vector.extract_strided_slice %351 {offsets = [0, 32], sizes = [2, 32], strides = [1, 1]} : vector<2x128xf32> to vector<2x32xf32>
    %354 = vector.extract_strided_slice %351 {offsets = [0, 64], sizes = [2, 32], strides = [1, 1]} : vector<2x128xf32> to vector<2x32xf32>
    %355 = vector.extract_strided_slice %351 {offsets = [0, 96], sizes = [2, 32], strides = [1, 1]} : vector<2x128xf32> to vector<2x32xf32>
    %356 = arith.mulf %353, %311 : vector<2x32xf32>
    %357 = arith.mulf %352, %354 : vector<2x32xf32>
    %358 = arith.addf %356, %357 : vector<2x32xf32>
    %359 = math.tanh %358 : vector<2x32xf32>
    %360 = arith.mulf %355, %359 : vector<2x32xf32>
    %361 = tpu.concatenate %360, %335 in 1 : vector<2x32xf32>, vector<2x32xf32> -> vector<2x64xf32>
    %c0_105 = arith.constant 0 : index
    %c0_106 = arith.constant 0 : index
    %362 = vector.load %arg4[%c0_105, %c0_106] : memref<64x128xf32, #tpu.memory_space<vmem>>, vector<64x128xf32>
    %cst_107 = arith.constant dense<0.000000e+00> : vector<2x128xf32>
    %363 = tpu.matmul %361, %362, %cst_107 {dimension_numbers = #tpu.dot_dimension_numbers<[1], [0], [0], [1], [0, 0, 1, 1], [], []>} : vector<2x64xf32>, vector<64x128xf32>, vector<2x128xf32> -> vector<2x128xf32>
    %c0_108 = arith.constant 0 : index
    %c0_109 = arith.constant 0 : index
    %364 = vector.load %arg5[%c0_108, %c0_109] : memref<1x128xf32, #tpu.memory_space<vmem>>, vector<1x128xf32>
    %365 = vector.broadcast %364 : vector<1x128xf32> to vector<2x128xf32>
    %366 = arith.addf %363, %365 : vector<2x128xf32>
    %367 = math.tanh %366 : vector<2x128xf32>
    %368 = arith.negf %366 : vector<2x128xf32>
    %369 = math.exp %368 : vector<2x128xf32>
    %cst_110 = arith.constant 1.000000e+00 : f32
    %370 = vector.broadcast %cst_110 : f32 to vector<2x128xf32>
    %371 = arith.addf %370, %369 : vector<2x128xf32>
    %372 = arith.divf %370, %371 : vector<2x128xf32>
    %373 = arith.select %5, %367, %372 : vector<2x128xi1>, vector<2x128xf32>
    %374 = vector.extract_strided_slice %373 {offsets = [0, 0], sizes = [2, 32], strides = [1, 1]} : vector<2x128xf32> to vector<2x32xf32>
    %375 = vector.extract_strided_slice %373 {offsets = [0, 32], sizes = [2, 32], strides = [1, 1]} : vector<2x128xf32> to vector<2x32xf32>
    %376 = vector.extract_strided_slice %373 {offsets = [0, 64], sizes = [2, 32], strides = [1, 1]} : vector<2x128xf32> to vector<2x32xf32>
    %377 = vector.extract_strided_slice %373 {offsets = [0, 96], sizes = [2, 32], strides = [1, 1]} : vector<2x128xf32> to vector<2x32xf32>
    %378 = arith.mulf %375, %333 : vector<2x32xf32>
    %379 = arith.mulf %374, %376 : vector<2x32xf32>
    %380 = arith.addf %378, %379 : vector<2x32xf32>
    %381 = math.tanh %380 : vector<2x32xf32>
    %382 = arith.mulf %377, %381 : vector<2x32xf32>
    %c8_i32 = arith.constant 8 : i32
    %c0_111 = arith.constant 0 : index
    %c0_112 = arith.constant 0 : index
    %c0_113 = arith.constant 0 : index
    %383 = vector.load %arg6[%c0_111, %c0_112, %c0_113] : memref<2x2x32xf32, #tpu.memory_space<vmem>>, vector<1x2x32xf32>
    %384 = vector.shape_cast %383 : vector<1x2x32xf32> to vector<2x32xf32>
    %385 = vector.shape_cast %360 : vector<2x32xf32> to vector<1x2x32xf32>
    tpu.vector_store %arg6[%c0_111, %c0_112, %c0_113], %385 {strides = array<i32>} : memref<2x2x32xf32, #tpu.memory_space<vmem>>, vector<1x2x32xf32>,
    %c1 = arith.constant 1 : index
    %c0_114 = arith.constant 0 : index
    %c0_115 = arith.constant 0 : index
    %386 = vector.load %arg6[%c1, %c0_114, %c0_115] : memref<2x2x32xf32, #tpu.memory_space<vmem>>, vector<1x2x32xf32>
    %387 = vector.shape_cast %386 : vector<1x2x32xf32> to vector<2x32xf32>
    %388 = vector.shape_cast %382 : vector<2x32xf32> to vector<1x2x32xf32>
    tpu.vector_store %arg6[%c1, %c0_114, %c0_115], %388 {strides = array<i32>} : memref<2x2x32xf32, #tpu.memory_space<vmem>>, vector<1x2x32xf32>,
    %c0_116 = arith.constant 0 : index
    %c0_117 = arith.constant 0 : index
    %c0_118 = arith.constant 0 : index
    %389 = vector.load %arg7[%c0_116, %c0_117, %c0_118] : memref<2x2x32xf32, #tpu.memory_space<vmem>>, vector<1x2x32xf32>
    %390 = vector.shape_cast %389 : vector<1x2x32xf32> to vector<2x32xf32>
    %391 = vector.shape_cast %358 : vector<2x32xf32> to vector<1x2x32xf32>
    tpu.vector_store %arg7[%c0_116, %c0_117, %c0_118], %391 {strides = array<i32>} : memref<2x2x32xf32, #tpu.memory_space<vmem>>, vector<1x2x32xf32>,
    %c1_119 = arith.constant 1 : index
    %c0_120 = arith.constant 0 : index
    %c0_121 = arith.constant 0 : index
    %392 = vector.load %arg7[%c1_119, %c0_120, %c0_121] : memref<2x2x32xf32, #tpu.memory_space<vmem>>, vector<1x2x32xf32>
    %393 = vector.shape_cast %392 : vector<1x2x32xf32> to vector<2x32xf32>
    %394 = vector.shape_cast %380 : vector<2x32xf32> to vector<1x2x32xf32>
    tpu.vector_store %arg7[%c1_119, %c0_120, %c0_121], %394 {strides = array<i32>} : memref<2x2x32xf32, #tpu.memory_space<vmem>>, vector<1x2x32xf32>,
    return
  }
  func.func @transform_0(%arg0: i32) -> (i32, i32, i32) {
    %c0_i32 = arith.constant 0 : i32
    %c0_i32_0 = arith.constant 0 : i32
    %c0_i32_1 = arith.constant 0 : i32
    %c0_i32_2 = arith.constant 0 : i32
    return %c0_i32, %c0_i32_0, %c0_i32_1 : i32, i32, i32
  }
  func.func @transform_1(%arg0: i32) -> (i32, i32) {
    %c0_i32 = arith.constant 0 : i32
    %c0_i32_0 = arith.constant 0 : i32
    %c0_i32_1 = arith.constant 0 : i32
    return %c0_i32, %c0_i32_0 : i32, i32
  }
  func.func @transform_2(%arg0: i32) -> (i32, i32) {
    %c0_i32 = arith.constant 0 : i32
    %c0_i32_0 = arith.constant 0 : i32
    %c0_i32_1 = arith.constant 0 : i32
    return %c0_i32, %c0_i32_0 : i32, i32
  }
  func.func @transform_3(%arg0: i32) -> (i32, i32) {
    %c0_i32 = arith.constant 0 : i32
    %c0_i32_0 = arith.constant 0 : i32
    %c0_i32_1 = arith.constant 0 : i32
    return %c0_i32, %c0_i32_0 : i32, i32
  }
  func.func @transform_4(%arg0: i32) -> (i32, i32) {
    %c0_i32 = arith.constant 0 : i32
    %c0_i32_0 = arith.constant 0 : i32
    %c0_i32_1 = arith.constant 0 : i32
    return %c0_i32, %c0_i32_0 : i32, i32
  }
  func.func @transform_5(%arg0: i32) -> (i32, i32, i32) {
    %c0_i32 = arith.constant 0 : i32
    %c0_i32_0 = arith.constant 0 : i32
    %c0_i32_1 = arith.constant 0 : i32
    %c0_i32_2 = arith.constant 0 : i32
    return %c0_i32, %c0_i32_0, %c0_i32_1 : i32, i32, i32
  }
  func.func @transform_6(%arg0: i32) -> (i32, i32, i32) {
    %c0_i32 = arith.constant 0 : i32
    %c0_i32_0 = arith.constant 0 : i32
    %c0_i32_1 = arith.constant 0 : i32
    %c0_i32_2 = arith.constant 0 : i32
    return %c0_i32, %c0_i32_0, %c0_i32_1 : i32, i32, i32
  }
}

</mosaic_0001>

<llo_original>
// kernel: encoder_forward.1
$region0: #{encoder_forward.1}
  #allocation0 [shape = 'u32[]', space=smem, size = 0x4, offset = 0x4, fixed_abs, tag = 'smem constant byte address 0x4 - core index']
  #allocation1 [shape = 'u32[144,128]{1,0:T(1,128)}', space=vmem, size = 0x12000, scoped, tag = 'internal scratch']
  %s0 = inlined_call_operand.vmem [shape: f32[8,2,32], index: 0, kind: input, shape index: {}]
  %s1 = inlined_call_operand.vmem [shape: f32[64,128], index: 1, kind: input, shape index: {}]
  %s2 = inlined_call_operand.vmem [shape: f32[1,128], index: 2, kind: input, shape index: {}]
  %s3 = inlined_call_operand.vmem [shape: f32[64,128], index: 3, kind: input, shape index: {}]
  %s4 = inlined_call_operand.vmem [shape: f32[1,128], index: 4, kind: input, shape index: {}]
  %s5 = inlined_call_operand.hbm [shape: f32[2,2,32], index: 5, kind: output, shape index: {0}]
  %s6 = inlined_call_operand.hbm [shape: f32[2,2,32], index: 6, kind: output, shape index: {1}]
  %7 = xla_tuple %s5, %s6
  %s8 = sld [smem:[#allocation0]]
  $region38: #{encoder_forward.1} parent=0
    _
  %s10 = ssub.s32 1, %s8
  %s11 = scalar_select 0, %s10, %s8
  $region1: #{encoder_forward.1} parent=0
    #allocation2 [shape = 'u8[2048]{0}', space=vmem, size = 0x800, scoped, tag = 'output window, operand 0, single buffered']
    #allocation3 [shape = 's32[1]{0}', space=sflag, size = 0x4, scoped, tag = 'scoped memory for encoder_forward.1']
    #allocation4 [shape = 'u8[2048]{0}', space=vmem, size = 0x800, scoped, tag = 'output window, operand 1, single buffered']
    #allocation5 [shape = 's32[1]{0}', space=sflag, size = 0x4, scoped, tag = 'scoped memory for encoder_forward.1']
    %12 = vsyncpa [#allocation3], 0
    %13 = vsyncpa [#allocation5], 0
    // Predicated region
    $region2: #{encoder_forward.1} parent=1 // pred_check
      _
    $region3: #{encoder_forward.1} parent=1 // pred_check_branch
      %15 = sbr.rel (0) target = $region5
    $region4: #{encoder_forward.1} parent=1 // pred_region
      _
    $region5: #{encoder_forward.1} parent=1 // pred_fallthru
      _
    // Predicated region
    $region6: #{encoder_forward.1} parent=1 // pred_check
      _
    $region7: #{encoder_forward.1} parent=1 // pred_check_branch
      %17 = sbr.rel (0) target = $region9
    $region8: #{encoder_forward.1} parent=1 // pred_region
      _
    $region9: #{encoder_forward.1} parent=1 // pred_fallthru
      _
    // Predicated region
    $region10: #{encoder_forward.1} parent=1 // pred_check
      _
    $region11: #{encoder_forward.1} parent=1 // pred_check_branch
      %19 = sbr.rel (0) target = $region13
    $region12: #{encoder_forward.1} parent=1 // pred_region
      _
    $region13: #{encoder_forward.1} parent=1 // pred_fallthru
      _
    // Predicated region
    $region14: #{encoder_forward.1} parent=1 // pred_check
      _
    $region15: #{encoder_forward.1} parent=1 // pred_check_branch
      %21 = sbr.rel (0) target = $region17
    $region16: #{encoder_forward.1} parent=1 // pred_region
      _
    $region17: #{encoder_forward.1} parent=1 // pred_fallthru
      _
    // Predicated region
    $region18: #{encoder_forward.1} parent=1 // pred_check
      _
    $region19: #{encoder_forward.1} parent=1 // pred_check_branch
      %23 = sbr.rel (0) target = $region21
    $region20: #{encoder_forward.1} parent=1 // pred_region
      _
    $region21: #{encoder_forward.1} parent=1 // pred_fallthru
      _
    %v24 = vlaneseq
    %v25 = vand.u32 %v24, 127
    %vm26 = vcmp.ge.s32.totalorder %v25, 64
    %vm27 = vcmp.lt.s32.totalorder %v25, 96
    %vm28 = vmand %vm26, %vm27
    %v29 = vld [vmem:[%s0] sm:$0x3]
    %vm30 = vcmask 261120
    %v31 = vsel %vm30, %v29, 0.0
    %v32 = vld [vmem:[%s1] sm:$0xff]
    %v33 = vld [vmem:[%s1 + $0x8] sm:$0xff]
    %v34 = vld [vmem:[%s1 + $0x10] sm:$0xff]
    %v35 = vld [vmem:[%s1 + $0x18] sm:$0xff]
    %v36 = vld [vmem:[%s1 + $0x20] sm:$0xff]
    %v37 = vld [vmem:[%s1 + $0x28] sm:$0xff]
    %v38 = vld [vmem:[%s1 + $0x30] sm:$0xff]
    %v39 = vld [vmem:[%s1 + $0x38] sm:$0xff]
    %v40 = vld [vmem:[%s2] sm:$0x1]
    %v42 = vlaneseq
    %v43 = vshrl.u32 %v42, 7
    %v44 = vsub.s32 0, %v43
    %v45 = vrot.slane %v40, %v44
    %vm47 = vcmask 523264
    %v49 = vsel %vm47, %v31, 0
    %51 = vmatprep.subr.mxu0 0.0
    %52 = vmatpush1.msra.mxu0 0.0
    %53 = vmatprep.subr.mxu0 0.0
    %54 = vmatpush1.msra.mxu0 0.0
    %55 = vmatprep.subr.mxu0 0.0
    %56 = vmatpush1.msra.mxu0 0.0
    %57 = vmatprep.subr.mxu0 0.0
    %58 = vmatpush1.msra.mxu0 0.0
    %59 = vmatprep.subr.mxu0 0.0
    %60 = vmatpush1.msra.mxu0 0.0
    %61 = vmatprep.subr.mxu0 0.0
    %62 = vmatpush1.msra.mxu0 0.0
    %63 = vmatprep.subr.mxu0 0.0
    %64 = vmatpush1.msra.mxu0 0.0
    %65 = vmatprep.subr.mxu0 0.0
    %66 = vmatpush1.msra.mxu0 0.0
    %67 = vmatprep.subr.mxu0 0.0
    %68 = vmatpush1.msra.mxu0 %v39
    %69 = vmatprep.subr.mxu0 0.0
    %70 = vmatpush1.msra.mxu0 %v38
    %71 = vmatprep.subr.mxu0 0.0
    %72 = vmatpush1.msra.mxu0 %v37
    %73 = vmatprep.subr.mxu0 0.0
    %74 = vmatpush1.msra.mxu0 %v36
    %75 = vmatprep.subr.mxu0 0.0
    %76 = vmatpush1.msra.mxu0 %v35
    %77 = vmatprep.subr.mxu0 0.0
    %78 = vmatpush1.msra.mxu0 %v34
    %79 = vmatprep.subr.mxu0 0.0
    %80 = vmatpush1.msra.mxu0 %v33
    %81 = vmatprep.subr.mxu0 0.0
    %82 = vmatpush1.msra.mxu0 %v32
    %83 = vmatprep.subr.mxu0 0.0
    %84 = vmatpush2.msra.mxu0 0.0
    %85 = vmatprep.subr.mxu0 0.0
    %86 = vmatpush2.msra.mxu0 0.0
    %87 = vmatprep.subr.mxu0 0.0
    %88 = vmatpush2.msra.mxu0 0.0
    %89 = vmatprep.subr.mxu0 0.0
    %90 = vmatpush2.msra.mxu0 0.0
    %91 = vmatprep.subr.mxu0 0.0
    %92 = vmatpush2.msra.mxu0 0.0
    %93 = vmatprep.subr.mxu0 0.0
    %94 = vmatpush2.msra.mxu0 0.0
    %95 = vmatprep.subr.mxu0 0.0
    %96 = vmatpush2.msra.mxu0 0.0
    %97 = vmatprep.subr.mxu0 0.0
    %98 = vmatpush2.msra.mxu0 0.0
    %99 = vmatprep.subr.mxu0 0.0
    %100 = vmatpush2.msra.mxu0 0.0
    %101 = vmatprep.subr.mxu0 0.0
    %102 = vmatpush2.msra.mxu0 0.0
    %103 = vmatprep.subr.mxu0 0.0
    %104 = vmatpush2.msra.mxu0 0.0
    %105 = vmatprep.subr.mxu0 0.0
    %106 = vmatpush2.msra.mxu0 0.0
    %107 = vmatprep.subr.mxu0 0.0
    %108 = vmatpush2.msra.mxu0 0.0
    %109 = vmatprep.subr.mxu0 0.0
    %110 = vmatpush2.msra.mxu0 0.0
    %111 = vmatprep.subr.mxu0 0.0
    %112 = vmatpush2.msra.mxu0 0.0
    %113 = vmatprep.subr.mxu0 0.0
    %114 = vmatpush2.msra.mxu0 0.0
    %115 = vmatprep.mubr.f32.mxu0 0.0
    %116 = vmatmul.mubr.f32.gmra.mxu0 %v49
    %v117 = vpop.f32.mrf.mxu0
    %v118 = vadd.f32 %v45, %v117
    %v119 = vpop.f32.mrf.mxu0
    %120 = vdwg.mxu0
    %v121 = vtanh.pop %v118
    %v122 = vxor.u32 %v118, 2147483648
    %v123 = vmul.f32 %v122, 1.442695
    %v124 = vpow.pop %v123
    %v125 = vadd.f32 %v124, 1.0
    %v126 = vrcp.pop %v125
    %v127 = vmul.f32 1.0, %v126
    %v128 = vsel %vm28, %v121, %v127
    %v129 = vmul.f32 %v128, 0.0
    %131 = vrot.lane.b32.xlu0 %v128, 64
    %v132 = vpop.permute.xlu0 %131
    %v134 = vmul.f32 %v128, %v132
    %136 = vrot.lane.b32.xlu0 %v134, 32
    %v137 = vpop.permute.xlu0 %136
    %v139 = vadd.f32 %v129, %v137
    %v140 = vtanh.pop %v139
    %142 = vrot.lane.b32.xlu0 %v140, 64
    %v143 = vpop.permute.xlu0 %142
    %v145 = vmul.f32 %v128, %v143
    %147 = vrot.lane.b32.xlu0 %v145, 32
    %v148 = vpop.permute.xlu0 %147
    %v150 = vsel %vm30, %v148, 0.0
    %v151 = vld [vmem:[%s3] sm:$0xff]
    %v152 = vld [vmem:[%s3 + $0x8] sm:$0xff]
    %v153 = vld [vmem:[%s3 + $0x10] sm:$0xff]
    %v154 = vld [vmem:[%s3 + $0x18] sm:$0xff]
    %v155 = vld [vmem:[%s3 + $0x20] sm:$0xff]
    %v156 = vld [vmem:[%s3 + $0x28] sm:$0xff]
    %v157 = vld [vmem:[%s3 + $0x30] sm:$0xff]
    %v158 = vld [vmem:[%s3 + $0x38] sm:$0xff]
    %v159 = vld [vmem:[%s4] sm:$0x1]
    %v161 = vlaneseq
    %v162 = vshrl.u32 %v161, 7
    %v163 = vsub.s32 0, %v162
    %v164 = vrot.slane %v159, %v163
    %v167 = vsel %vm47, %v150, 0
    %169 = vmatprep.subr.mxu0 0.0
    %170 = vmatpush1.msra.mxu0 0.0
    %171 = vmatprep.subr.mxu0 0.0
    %172 = vmatpush1.msra.mxu0 0.0
    %173 = vmatprep.subr.mxu0 0.0
    %174 = vmatpush1.msra.mxu0 0.0
    %175 = vmatprep.subr.mxu0 0.0
    %176 = vmatpush1.msra.mxu0 0.0
    %177 = vmatprep.subr.mxu0 0.0
    %178 = vmatpush1.msra.mxu0 0.0
    %179 = vmatprep.subr.mxu0 0.0
    %180 = vmatpush1.msra.mxu0 0.0
    %181 = vmatprep.subr.mxu0 0.0
    %182 = vmatpush1.msra.mxu0 0.0
    %183 = vmatprep.subr.mxu0 0.0
    %184 = vmatpush1.msra.mxu0 0.0
    %185 = vmatprep.subr.mxu0 0.0
    %186 = vmatpush1.msra.mxu0 %v158
    %187 = vmatprep.subr.mxu0 0.0
    %188 = vmatpush1.msra.mxu0 %v157
    %189 = vmatprep.subr.mxu0 0.0
    %190 = vmatpush1.msra.mxu0 %v156
    %191 = vmatprep.subr.mxu0 0.0
    %192 = vmatpush1.msra.mxu0 %v155
    %193 = vmatprep.subr.mxu0 0.0
    %194 = vmatpush1.msra.mxu0 %v154
    %195 = vmatprep.subr.mxu0 0.0
    %196 = vmatpush1.msra.mxu0 %v153
    %197 = vmatprep.subr.mxu0 0.0
    %198 = vmatpush1.msra.mxu0 %v152
    %199 = vmatprep.subr.mxu0 0.0
    %200 = vmatpush1.msra.mxu0 %v151
    %201 = vmatprep.subr.mxu0 0.0
    %202 = vmatpush2.msra.mxu0 0.0
    %203 = vmatprep.subr.mxu0 0.0
    %204 = vmatpush2.msra.mxu0 0.0
    %205 = vmatprep.subr.mxu0 0.0
    %206 = vmatpush2.msra.mxu0 0.0
    %207 = vmatprep.subr.mxu0 0.0
    %208 = vmatpush2.msra.mxu0 0.0
    %209 = vmatprep.subr.mxu0 0.0
    %210 = vmatpush2.msra.mxu0 0.0
    %211 = vmatprep.subr.mxu0 0.0
    %212 = vmatpush2.msra.mxu0 0.0
    %213 = vmatprep.subr.mxu0 0.0
    %214 = vmatpush2.msra.mxu0 0.0
    %215 = vmatprep.subr.mxu0 0.0
    %216 = vmatpush2.msra.mxu0 0.0
    %217 = vmatprep.subr.mxu0 0.0
    %218 = vmatpush2.msra.mxu0 0.0
    %219 = vmatprep.subr.mxu0 0.0
    %220 = vmatpush2.msra.mxu0 0.0
    %221 = vmatprep.subr.mxu0 0.0
    %222 = vmatpush2.msra.mxu0 0.0
    %223 = vmatprep.subr.mxu0 0.0
    %224 = vmatpush2.msra.mxu0 0.0
    %225 = vmatprep.subr.mxu0 0.0
    %226 = vmatpush2.msra.mxu0 0.0
    %227 = vmatprep.subr.mxu0 0.0
    %228 = vmatpush2.msra.mxu0 0.0
    %229 = vmatprep.subr.mxu0 0.0
    %230 = vmatpush2.msra.mxu0 0.0
    %231 = vmatprep.subr.mxu0 0.0
    %232 = vmatpush2.msra.mxu0 0.0
    %233 = vmatprep.mubr.f32.mxu0 0.0
    %234 = vmatmul.mubr.f32.gmra.mxu0 %v167
    %v235 = vpop.f32.mrf.mxu0
    %v236 = vadd.f32 %v164, %v235
    %v237 = vpop.f32.mrf.mxu0
    %238 = vdwg.mxu0
    %v239 = vtanh.pop %v236
    %v240 = vxor.u32 %v236, 2147483648
    %v241 = vmul.f32 %v240, 1.442695
    %v242 = vpow.pop %v241
    %v243 = vadd.f32 %v242, 1.0
    %v244 = vrcp.pop %v243
    %v245 = vmul.f32 1.0, %v244
    %v246 = vsel %vm28, %v239, %v245
    %v247 = vmul.f32 %v246, 0.0
    %249 = vrot.lane.b32.xlu0 %v246, 64
    %v250 = vpop.permute.xlu0 %249
    %v252 = vmul.f32 %v246, %v250
    %254 = vrot.lane.b32.xlu0 %v252, 32
    %v255 = vpop.permute.xlu0 %254
    %v257 = vadd.f32 %v247, %v255
    %v258 = vtanh.pop %v257
    %260 = vrot.lane.b32.xlu0 %v258, 64
    %v261 = vpop.permute.xlu0 %260
    %v263 = vmul.f32 %v246, %v261
    %s264 = scalar_lea.vmem %s0, 2
    %v265 = vld [vmem:[%s264] sm:$0x3]
    %266 = vrot.lane.b32.xlu0 %v145, 64
    %v267 = vpop.permute.xlu0 %266
    %v269 = vsel %vm30, %v265, %v267
    %v271 = vsel %vm47, %v269, 0
    %273 = vmatprep.subr.mxu0 0.0
    %274 = vmatpush1.msra.mxu0 0.0
    %275 = vmatprep.subr.mxu0 0.0
    %276 = vmatpush1.msra.mxu0 0.0
    %277 = vmatprep.subr.mxu0 0.0
    %278 = vmatpush1.msra.mxu0 0.0
    %279 = vmatprep.subr.mxu0 0.0
    %280 = vmatpush1.msra.mxu0 0.0
    %281 = vmatprep.subr.mxu0 0.0
    %282 = vmatpush1.msra.mxu0 0.0
    %283 = vmatprep.subr.mxu0 0.0
    %284 = vmatpush1.msra.mxu0 0.0
    %285 = vmatprep.subr.mxu0 0.0
    %286 = vmatpush1.msra.mxu0 0.0
    %287 = vmatprep.subr.mxu0 0.0
    %288 = vmatpush1.msra.mxu0 0.0
    %289 = vmatprep.subr.mxu0 0.0
    %290 = vmatpush1.msra.mxu0 %v39
    %291 = vmatprep.subr.mxu0 0.0
    %292 = vmatpush1.msra.mxu0 %v38
    %293 = vmatprep.subr.mxu0 0.0
    %294 = vmatpush1.msra.mxu0 %v37
    %295 = vmatprep.subr.mxu0 0.0
    %296 = vmatpush1.msra.mxu0 %v36
    %297 = vmatprep.subr.mxu0 0.0
    %298 = vmatpush1.msra.mxu0 %v35
    %299 = vmatprep.subr.mxu0 0.0
    %300 = vmatpush1.msra.mxu0 %v34
    %301 = vmatprep.subr.mxu0 0.0
    %302 = vmatpush1.msra.mxu0 %v33
    %303 = vmatprep.subr.mxu0 0.0
    %304 = vmatpush1.msra.mxu0 %v32
    %305 = vmatprep.subr.mxu0 0.0
    %306 = vmatpush2.msra.mxu0 0.0
    %307 = vmatprep.subr.mxu0 0.0
    %308 = vmatpush2.msra.mxu0 0.0
    %309 = vmatprep.subr.mxu0 0.0
    %310 = vmatpush2.msra.mxu0 0.0
    %311 = vmatprep.subr.mxu0 0.0
    %312 = vmatpush2.msra.mxu0 0.0
    %313 = vmatprep.subr.mxu0 0.0
    %314 = vmatpush2.msra.mxu0 0.0
    %315 = vmatprep.subr.mxu0 0.0
    %316 = vmatpush2.msra.mxu0 0.0
    %317 = vmatprep.subr.mxu0 0.0
    %318 = vmatpush2.msra.mxu0 0.0
    %319 = vmatprep.subr.mxu0 0.0
    %320 = vmatpush2.msra.mxu0 0.0
    %321 = vmatprep.subr.mxu0 0.0
    %322 = vmatpush2.msra.mxu0 0.0
    %323 = vmatprep.subr.mxu0 0.0
    %324 = vmatpush2.msra.mxu0 0.0
    %325 = vmatprep.subr.mxu0 0.0
    %326 = vmatpush2.msra.mxu0 0.0
    %327 = vmatprep.subr.mxu0 0.0
    %328 = vmatpush2.msra.mxu0 0.0
    %329 = vmatprep.subr.mxu0 0.0
    %330 = vmatpush2.msra.mxu0 0.0
    %331 = vmatprep.subr.mxu0 0.0
    %332 = vmatpush2.msra.mxu0 0.0
    %333 = vmatprep.subr.mxu0 0.0
    %334 = vmatpush2.msra.mxu0 0.0
    %335 = vmatprep.subr.mxu0 0.0
    %336 = vmatpush2.msra.mxu0 0.0
    %337 = vmatprep.mubr.f32.mxu0 0.0
    %338 = vmatmul.mubr.f32.gmra.mxu0 %v271
    %v339 = vpop.f32.mrf.mxu0
    %v340 = vadd.f32 %v45, %v339
    %v341 = vpop.f32.mrf.mxu0
    %342 = vdwg.mxu0
    %v343 = vtanh.pop %v340
    %v344 = vxor.u32 %v340, 2147483648
    %v345 = vmul.f32 %v344, 1.442695
    %v346 = vpow.pop %v345
    %v347 = vadd.f32 %v346, 1.0
    %v348 = vrcp.pop %v347
    %v349 = vmul.f32 1.0, %v348
    %v350 = vsel %vm28, %v343, %v349
    %v351 = vmul.f32 %v350, %v139
    %353 = vrot.lane.b32.xlu0 %v350, 64
    %v354 = vpop.permute.xlu0 %353
    %v356 = vmul.f32 %v350, %v354
    %358 = vrot.lane.b32.xlu0 %v356, 32
    %v359 = vpop.permute.xlu0 %358
    %v361 = vadd.f32 %v351, %v359
    %v362 = vtanh.pop %v361
    %364 = vrot.lane.b32.xlu0 %v362, 64
    %v365 = vpop.permute.xlu0 %364
    %v367 = vmul.f32 %v350, %v365
    %369 = vrot.lane.b32.xlu0 %v367, 32
    %v370 = vpop.permute.xlu0 %369
    %373 = vrot.lane.b32.xlu0 %v263, 64
    %v374 = vpop.permute.xlu0 %373
    %v376 = vsel %vm30, %v370, %v374
    %v378 = vsel %vm47, %v376, 0
    %380 = vmatprep.subr.mxu0 0.0
    %381 = vmatpush1.msra.mxu0 0.0
    %382 = vmatprep.subr.mxu0 0.0
    %383 = vmatpush1.msra.mxu0 0.0
    %384 = vmatprep.subr.mxu0 0.0
    %385 = vmatpush1.msra.mxu0 0.0
    %386 = vmatprep.subr.mxu0 0.0
    %387 = vmatpush1.msra.mxu0 0.0
    %388 = vmatprep.subr.mxu0 0.0
    %389 = vmatpush1.msra.mxu0 0.0
    %390 = vmatprep.subr.mxu0 0.0
    %391 = vmatpush1.msra.mxu0 0.0
    %392 = vmatprep.subr.mxu0 0.0
    %393 = vmatpush1.msra.mxu0 0.0
    %394 = vmatprep.subr.mxu0 0.0
    %395 = vmatpush1.msra.mxu0 0.0
    %396 = vmatprep.subr.mxu0 0.0
    %397 = vmatpush1.msra.mxu0 %v158
    %398 = vmatprep.subr.mxu0 0.0
    %399 = vmatpush1.msra.mxu0 %v157
    %400 = vmatprep.subr.mxu0 0.0
    %401 = vmatpush1.msra.mxu0 %v156
    %402 = vmatprep.subr.mxu0 0.0
    %403 = vmatpush1.msra.mxu0 %v155
    %404 = vmatprep.subr.mxu0 0.0
    %405 = vmatpush1.msra.mxu0 %v154
    %406 = vmatprep.subr.mxu0 0.0
    %407 = vmatpush1.msra.mxu0 %v153
    %408 = vmatprep.subr.mxu0 0.0
    %409 = vmatpush1.msra.mxu0 %v152
    %410 = vmatprep.subr.mxu0 0.0
    %411 = vmatpush1.msra.mxu0 %v151
    %412 = vmatprep.subr.mxu0 0.0
    %413 = vmatpush2.msra.mxu0 0.0
    %414 = vmatprep.subr.mxu0 0.0
    %415 = vmatpush2.msra.mxu0 0.0
    %416 = vmatprep.subr.mxu0 0.0
    %417 = vmatpush2.msra.mxu0 0.0
    %418 = vmatprep.subr.mxu0 0.0
    %419 = vmatpush2.msra.mxu0 0.0
    %420 = vmatprep.subr.mxu0 0.0
    %421 = vmatpush2.msra.mxu0 0.0
    %422 = vmatprep.subr.mxu0 0.0
    %423 = vmatpush2.msra.mxu0 0.0
    %424 = vmatprep.subr.mxu0 0.0
    %425 = vmatpush2.msra.mxu0 0.0
    %426 = vmatprep.subr.mxu0 0.0
    %427 = vmatpush2.msra.mxu0 0.0
    %428 = vmatprep.subr.mxu0 0.0
    %429 = vmatpush2.msra.mxu0 0.0
    %430 = vmatprep.subr.mxu0 0.0
    %431 = vmatpush2.msra.mxu0 0.0
    %432 = vmatprep.subr.mxu0 0.0
    %433 = vmatpush2.msra.mxu0 0.0
    %434 = vmatprep.subr.mxu0 0.0
    %435 = vmatpush2.msra.mxu0 0.0
    %436 = vmatprep.subr.mxu0 0.0
    %437 = vmatpush2.msra.mxu0 0.0
    %438 = vmatprep.subr.mxu0 0.0
    %439 = vmatpush2.msra.mxu0 0.0
    %440 = vmatprep.subr.mxu0 0.0
    %441 = vmatpush2.msra.mxu0 0.0
    %442 = vmatprep.subr.mxu0 0.0
    %443 = vmatpush2.msra.mxu0 0.0
    %444 = vmatprep.mubr.f32.mxu0 0.0
    %445 = vmatmul.mubr.f32.gmra.mxu0 %v378
    %v446 = vpop.f32.mrf.mxu0
    %v447 = vadd.f32 %v164, %v446
    %v448 = vpop.f32.mrf.mxu0
    %449 = vdwg.mxu0
    %v450 = vtanh.pop %v447
    %v451 = vxor.u32 %v447, 2147483648
    %v452 = vmul.f32 %v451, 1.442695
    %v453 = vpow.pop %v452
    %v454 = vadd.f32 %v453, 1.0
    %v455 = vrcp.pop %v454
    %v456 = vmul.f32 1.0, %v455
    %v457 = vsel %vm28, %v450, %v456
    %v458 = vmul.f32 %v457, %v257
    %460 = vrot.lane.b32.xlu0 %v457, 64
    %v461 = vpop.permute.xlu0 %460
    %v463 = vmul.f32 %v457, %v461
    %465 = vrot.lane.b32.xlu0 %v463, 32
    %v466 = vpop.permute.xlu0 %465
    %v468 = vadd.f32 %v458, %v466
    %v469 = vtanh.pop %v468
    %471 = vrot.lane.b32.xlu0 %v469, 64
    %v472 = vpop.permute.xlu0 %471
    %v474 = vmul.f32 %v457, %v472
    %s475 = scalar_lea.vmem %s0, 4
    %v476 = vld [vmem:[%s475] sm:$0x3]
    %477 = vrot.lane.b32.xlu0 %v367, 64
    %v478 = vpop.permute.xlu0 %477
    %v480 = vsel %vm30, %v476, %v478
    %v482 = vsel %vm47, %v480, 0
    %484 = vmatprep.subr.mxu0 0.0
    %485 = vmatpush1.msra.mxu0 0.0
    %486 = vmatprep.subr.mxu0 0.0
    %487 = vmatpush1.msra.mxu0 0.0
    %488 = vmatprep.subr.mxu0 0.0
    %489 = vmatpush1.msra.mxu0 0.0
    %490 = vmatprep.subr.mxu0 0.0
    %491 = vmatpush1.msra.mxu0 0.0
    %492 = vmatprep.subr.mxu0 0.0
    %493 = vmatpush1.msra.mxu0 0.0
    %494 = vmatprep.subr.mxu0 0.0
    %495 = vmatpush1.msra.mxu0 0.0
    %496 = vmatprep.subr.mxu0 0.0
    %497 = vmatpush1.msra.mxu0 0.0
    %498 = vmatprep.subr.mxu0 0.0
    %499 = vmatpush1.msra.mxu0 0.0
    %500 = vmatprep.subr.mxu0 0.0
    %501 = vmatpush1.msra.mxu0 %v39
    %502 = vmatprep.subr.mxu0 0.0
    %503 = vmatpush1.msra.mxu0 %v38
    %504 = vmatprep.subr.mxu0 0.0
    %505 = vmatpush1.msra.mxu0 %v37
    %506 = vmatprep.subr.mxu0 0.0
    %507 = vmatpush1.msra.mxu0 %v36
    %508 = vmatprep.subr.mxu0 0.0
    %509 = vmatpush1.msra.mxu0 %v35
    %510 = vmatprep.subr.mxu0 0.0
    %511 = vmatpush1.msra.mxu0 %v34
    %512 = vmatprep.subr.mxu0 0.0
    %513 = vmatpush1.msra.mxu0 %v33
    %514 = vmatprep.subr.mxu0 0.0
    %515 = vmatpush1.msra.mxu0 %v32
    %516 = vmatprep.subr.mxu0 0.0
    %517 = vmatpush2.msra.mxu0 0.0
    %518 = vmatprep.subr.mxu0 0.0
    %519 = vmatpush2.msra.mxu0 0.0
    %520 = vmatprep.subr.mxu0 0.0
    %521 = vmatpush2.msra.mxu0 0.0
    %522 = vmatprep.subr.mxu0 0.0
    %523 = vmatpush2.msra.mxu0 0.0
    %524 = vmatprep.subr.mxu0 0.0
    %525 = vmatpush2.msra.mxu0 0.0
    %526 = vmatprep.subr.mxu0 0.0
    %527 = vmatpush2.msra.mxu0 0.0
    %528 = vmatprep.subr.mxu0 0.0
    %529 = vmatpush2.msra.mxu0 0.0
    %530 = vmatprep.subr.mxu0 0.0
    %531 = vmatpush2.msra.mxu0 0.0
    %532 = vmatprep.subr.mxu0 0.0
    %533 = vmatpush2.msra.mxu0 0.0
    %534 = vmatprep.subr.mxu0 0.0
    %535 = vmatpush2.msra.mxu0 0.0
    %536 = vmatprep.subr.mxu0 0.0
    %537 = vmatpush2.msra.mxu0 0.0
    %538 = vmatprep.subr.mxu0 0.0
    %539 = vmatpush2.msra.mxu0 0.0
    %540 = vmatprep.subr.mxu0 0.0
    %541 = vmatpush2.msra.mxu0 0.0
    %542 = vmatprep.subr.mxu0 0.0
    %543 = vmatpush2.msra.mxu0 0.0
    %544 = vmatprep.subr.mxu0 0.0
    %545 = vmatpush2.msra.mxu0 0.0
    %546 = vmatprep.subr.mxu0 0.0
    %547 = vmatpush2.msra.mxu0 0.0
    %548 = vmatprep.mubr.f32.mxu0 0.0
    %549 = vmatmul.mubr.f32.gmra.mxu0 %v482
    %v550 = vpop.f32.mrf.mxu0
    %v551 = vadd.f32 %v45, %v550
    %v552 = vpop.f32.mrf.mxu0
    %553 = vdwg.mxu0
    %v554 = vtanh.pop %v551
    %v555 = vxor.u32 %v551, 2147483648
    %v556 = vmul.f32 %v555, 1.442695
    %v557 = vpow.pop %v556
    %v558 = vadd.f32 %v557, 1.0
    %v559 = vrcp.pop %v558
    %v560 = vmul.f32 1.0, %v559
    %v561 = vsel %vm28, %v554, %v560
    %v562 = vmul.f32 %v561, %v361
    %564 = vrot.lane.b32.xlu0 %v561, 64
    %v565 = vpop.permute.xlu0 %564
    %v567 = vmul.f32 %v561, %v565
    %569 = vrot.lane.b32.xlu0 %v567, 32
    %v570 = vpop.permute.xlu0 %569
    %v572 = vadd.f32 %v562, %v570
    %v573 = vtanh.pop %v572
    %575 = vrot.lane.b32.xlu0 %v573, 64
    %v576 = vpop.permute.xlu0 %575
    %v578 = vmul.f32 %v561, %v576
    %580 = vrot.lane.b32.xlu0 %v578, 32
    %v581 = vpop.permute.xlu0 %580
    %584 = vrot.lane.b32.xlu0 %v474, 64
    %v585 = vpop.permute.xlu0 %584
    %v587 = vsel %vm30, %v581, %v585
    %v589 = vsel %vm47, %v587, 0
    %591 = vmatprep.subr.mxu0 0.0
    %592 = vmatpush1.msra.mxu0 0.0
    %593 = vmatprep.subr.mxu0 0.0
    %594 = vmatpush1.msra.mxu0 0.0
    %595 = vmatprep.subr.mxu0 0.0
    %596 = vmatpush1.msra.mxu0 0.0
    %597 = vmatprep.subr.mxu0 0.0
    %598 = vmatpush1.msra.mxu0 0.0
    %599 = vmatprep.subr.mxu0 0.0
    %600 = vmatpush1.msra.mxu0 0.0
    %601 = vmatprep.subr.mxu0 0.0
    %602 = vmatpush1.msra.mxu0 0.0
    %603 = vmatprep.subr.mxu0 0.0
    %604 = vmatpush1.msra.mxu0 0.0
    %605 = vmatprep.subr.mxu0 0.0
    %606 = vmatpush1.msra.mxu0 0.0
    %607 = vmatprep.subr.mxu0 0.0
    %608 = vmatpush1.msra.mxu0 %v158
    %609 = vmatprep.subr.mxu0 0.0
    %610 = vmatpush1.msra.mxu0 %v157
    %611 = vmatprep.subr.mxu0 0.0
    %612 = vmatpush1.msra.mxu0 %v156
    %613 = vmatprep.subr.mxu0 0.0
    %614 = vmatpush1.msra.mxu0 %v155
    %615 = vmatprep.subr.mxu0 0.0
    %616 = vmatpush1.msra.mxu0 %v154
    %617 = vmatprep.subr.mxu0 0.0
    %618 = vmatpush1.msra.mxu0 %v153
    %619 = vmatprep.subr.mxu0 0.0
    %620 = vmatpush1.msra.mxu0 %v152
    %621 = vmatprep.subr.mxu0 0.0
    %622 = vmatpush1.msra.mxu0 %v151
    %623 = vmatprep.subr.mxu0 0.0
    %624 = vmatpush2.msra.mxu0 0.0
    %625 = vmatprep.subr.mxu0 0.0
    %626 = vmatpush2.msra.mxu0 0.0
    %627 = vmatprep.subr.mxu0 0.0
    %628 = vmatpush2.msra.mxu0 0.0
    %629 = vmatprep.subr.mxu0 0.0
    %630 = vmatpush2.msra.mxu0 0.0
    %631 = vmatprep.subr.mxu0 0.0
    %632 = vmatpush2.msra.mxu0 0.0
    %633 = vmatprep.subr.mxu0 0.0
    %634 = vmatpush2.msra.mxu0 0.0
    %635 = vmatprep.subr.mxu0 0.0
    %636 = vmatpush2.msra.mxu0 0.0
    %637 = vmatprep.subr.mxu0 0.0
    %638 = vmatpush2.msra.mxu0 0.0
    %639 = vmatprep.subr.mxu0 0.0
    %640 = vmatpush2.msra.mxu0 0.0
    %641 = vmatprep.subr.mxu0 0.0
    %642 = vmatpush2.msra.mxu0 0.0
    %643 = vmatprep.subr.mxu0 0.0
    %644 = vmatpush2.msra.mxu0 0.0
    %645 = vmatprep.subr.mxu0 0.0
    %646 = vmatpush2.msra.mxu0 0.0
    %647 = vmatprep.subr.mxu0 0.0
    %648 = vmatpush2.msra.mxu0 0.0
    %649 = vmatprep.subr.mxu0 0.0
    %650 = vmatpush2.msra.mxu0 0.0
    %651 = vmatprep.subr.mxu0 0.0
    %652 = vmatpush2.msra.mxu0 0.0
    %653 = vmatprep.subr.mxu0 0.0
    %654 = vmatpush2.msra.mxu0 0.0
    %655 = vmatprep.mubr.f32.mxu0 0.0
    %656 = vmatmul.mubr.f32.gmra.mxu0 %v589
    %v657 = vpop.f32.mrf.mxu0
    %v658 = vadd.f32 %v164, %v657
    %v659 = vpop.f32.mrf.mxu0
    %660 = vdwg.mxu0
    %v661 = vtanh.pop %v658
    %v662 = vxor.u32 %v658, 2147483648
    %v663 = vmul.f32 %v662, 1.442695
    %v664 = vpow.pop %v663
    %v665 = vadd.f32 %v664, 1.0
    %v666 = vrcp.pop %v665
    %v667 = vmul.f32 1.0, %v666
    %v668 = vsel %vm28, %v661, %v667
    %v669 = vmul.f32 %v668, %v468
    %671 = vrot.lane.b32.xlu0 %v668, 64
    %v672 = vpop.permute.xlu0 %671
    %v674 = vmul.f32 %v668, %v672
    %676 = vrot.lane.b32.xlu0 %v674, 32
    %v677 = vpop.permute.xlu0 %676
    %v679 = vadd.f32 %v669, %v677
    %v680 = vtanh.pop %v679
    %682 = vrot.lane.b32.xlu0 %v680, 64
    %v683 = vpop.permute.xlu0 %682
    %v685 = vmul.f32 %v668, %v683
    %s686 = scalar_lea.vmem %s0, 6
    %v687 = vld [vmem:[%s686] sm:$0x3]
    %688 = vrot.lane.b32.xlu0 %v578, 64
    %v689 = vpop.permute.xlu0 %688
    %v691 = vsel %vm30, %v687, %v689
    %v693 = vsel %vm47, %v691, 0
    %695 = vmatprep.subr.mxu0 0.0
    %696 = vmatpush1.msra.mxu0 0.0
    %697 = vmatprep.subr.mxu0 0.0
    %698 = vmatpush1.msra.mxu0 0.0
    %699 = vmatprep.subr.mxu0 0.0
    %700 = vmatpush1.msra.mxu0 0.0
    %701 = vmatprep.subr.mxu0 0.0
    %702 = vmatpush1.msra.mxu0 0.0
    %703 = vmatprep.subr.mxu0 0.0
    %704 = vmatpush1.msra.mxu0 0.0
    %705 = vmatprep.subr.mxu0 0.0
    %706 = vmatpush1.msra.mxu0 0.0
    %707 = vmatprep.subr.mxu0 0.0
    %708 = vmatpush1.msra.mxu0 0.0
    %709 = vmatprep.subr.mxu0 0.0
    %710 = vmatpush1.msra.mxu0 0.0
    %711 = vmatprep.subr.mxu0 0.0
    %712 = vmatpush1.msra.mxu0 %v39
    %713 = vmatprep.subr.mxu0 0.0
    %714 = vmatpush1.msra.mxu0 %v38
    %715 = vmatprep.subr.mxu0 0.0
    %716 = vmatpush1.msra.mxu0 %v37
    %717 = vmatprep.subr.mxu0 0.0
    %718 = vmatpush1.msra.mxu0 %v36
    %719 = vmatprep.subr.mxu0 0.0
    %720 = vmatpush1.msra.mxu0 %v35
    %721 = vmatprep.subr.mxu0 0.0
    %722 = vmatpush1.msra.mxu0 %v34
    %723 = vmatprep.subr.mxu0 0.0
    %724 = vmatpush1.msra.mxu0 %v33
    %725 = vmatprep.subr.mxu0 0.0
    %726 = vmatpush1.msra.mxu0 %v32
    %727 = vmatprep.subr.mxu0 0.0
    %728 = vmatpush2.msra.mxu0 0.0
    %729 = vmatprep.subr.mxu0 0.0
    %730 = vmatpush2.msra.mxu0 0.0
    %731 = vmatprep.subr.mxu0 0.0
    %732 = vmatpush2.msra.mxu0 0.0
    %733 = vmatprep.subr.mxu0 0.0
    %734 = vmatpush2.msra.mxu0 0.0
    %735 = vmatprep.subr.mxu0 0.0
    %736 = vmatpush2.msra.mxu0 0.0
    %737 = vmatprep.subr.mxu0 0.0
    %738 = vmatpush2.msra.mxu0 0.0
    %739 = vmatprep.subr.mxu0 0.0
    %740 = vmatpush2.msra.mxu0 0.0
    %741 = vmatprep.subr.mxu0 0.0
    %742 = vmatpush2.msra.mxu0 0.0
    %743 = vmatprep.subr.mxu0 0.0
    %744 = vmatpush2.msra.mxu0 0.0
    %745 = vmatprep.subr.mxu0 0.0
    %746 = vmatpush2.msra.mxu0 0.0
    %747 = vmatprep.subr.mxu0 0.0
    %748 = vmatpush2.msra.mxu0 0.0
    %749 = vmatprep.subr.mxu0 0.0
    %750 = vmatpush2.msra.mxu0 0.0
    %751 = vmatprep.subr.mxu0 0.0
    %752 = vmatpush2.msra.mxu0 0.0
    %753 = vmatprep.subr.mxu0 0.0
    %754 = vmatpush2.msra.mxu0 0.0
    %755 = vmatprep.subr.mxu0 0.0
    %756 = vmatpush2.msra.mxu0 0.0
    %757 = vmatprep.subr.mxu0 0.0
    %758 = vmatpush2.msra.mxu0 0.0
    %759 = vmatprep.mubr.f32.mxu0 0.0
    %760 = vmatmul.mubr.f32.gmra.mxu0 %v693
    %v761 = vpop.f32.mrf.mxu0
    %v762 = vadd.f32 %v45, %v761
    %v763 = vpop.f32.mrf.mxu0
    %764 = vdwg.mxu0
    %v765 = vtanh.pop %v762
    %v766 = vxor.u32 %v762, 2147483648
    %v767 = vmul.f32 %v766, 1.442695
    %v768 = vpow.pop %v767
    %v769 = vadd.f32 %v768, 1.0
    %v770 = vrcp.pop %v769
    %v771 = vmul.f32 1.0, %v770
    %v772 = vsel %vm28, %v765, %v771
    %v773 = vmul.f32 %v772, %v572
    %775 = vrot.lane.b32.xlu0 %v772, 64
    %v776 = vpop.permute.xlu0 %775
    %v778 = vmul.f32 %v772, %v776
    %780 = vrot.lane.b32.xlu0 %v778, 32
    %v781 = vpop.permute.xlu0 %780
    %v783 = vadd.f32 %v773, %v781
    %v784 = vtanh.pop %v783
    %786 = vrot.lane.b32.xlu0 %v784, 64
    %v787 = vpop.permute.xlu0 %786
    %v789 = vmul.f32 %v772, %v787
    %791 = vrot.lane.b32.xlu0 %v789, 32
    %v792 = vpop.permute.xlu0 %791
    %795 = vrot.lane.b32.xlu0 %v685, 64
    %v796 = vpop.permute.xlu0 %795
    %v798 = vsel %vm30, %v792, %v796
    %v800 = vsel %vm47, %v798, 0
    %802 = vmatprep.subr.mxu0 0.0
    %803 = vmatpush1.msra.mxu0 0.0
    %804 = vmatprep.subr.mxu0 0.0
    %805 = vmatpush1.msra.mxu0 0.0
    %806 = vmatprep.subr.mxu0 0.0
    %807 = vmatpush1.msra.mxu0 0.0
    %808 = vmatprep.subr.mxu0 0.0
    %809 = vmatpush1.msra.mxu0 0.0
    %810 = vmatprep.subr.mxu0 0.0
    %811 = vmatpush1.msra.mxu0 0.0
    %812 = vmatprep.subr.mxu0 0.0
    %813 = vmatpush1.msra.mxu0 0.0
    %814 = vmatprep.subr.mxu0 0.0
    %815 = vmatpush1.msra.mxu0 0.0
    %816 = vmatprep.subr.mxu0 0.0
    %817 = vmatpush1.msra.mxu0 0.0
    %818 = vmatprep.subr.mxu0 0.0
    %819 = vmatpush1.msra.mxu0 %v158
    %820 = vmatprep.subr.mxu0 0.0
    %821 = vmatpush1.msra.mxu0 %v157
    %822 = vmatprep.subr.mxu0 0.0
    %823 = vmatpush1.msra.mxu0 %v156
    %824 = vmatprep.subr.mxu0 0.0
    %825 = vmatpush1.msra.mxu0 %v155
    %826 = vmatprep.subr.mxu0 0.0
    %827 = vmatpush1.msra.mxu0 %v154
    %828 = vmatprep.subr.mxu0 0.0
    %829 = vmatpush1.msra.mxu0 %v153
    %830 = vmatprep.subr.mxu0 0.0
    %831 = vmatpush1.msra.mxu0 %v152
    %832 = vmatprep.subr.mxu0 0.0
    %833 = vmatpush1.msra.mxu0 %v151
    %834 = vmatprep.subr.mxu0 0.0
    %835 = vmatpush2.msra.mxu0 0.0
    %836 = vmatprep.subr.mxu0 0.0
    %837 = vmatpush2.msra.mxu0 0.0
    %838 = vmatprep.subr.mxu0 0.0
    %839 = vmatpush2.msra.mxu0 0.0
    %840 = vmatprep.subr.mxu0 0.0
    %841 = vmatpush2.msra.mxu0 0.0
    %842 = vmatprep.subr.mxu0 0.0
    %843 = vmatpush2.msra.mxu0 0.0
    %844 = vmatprep.subr.mxu0 0.0
    %845 = vmatpush2.msra.mxu0 0.0
    %846 = vmatprep.subr.mxu0 0.0
    %847 = vmatpush2.msra.mxu0 0.0
    %848 = vmatprep.subr.mxu0 0.0
    %849 = vmatpush2.msra.mxu0 0.0
    %850 = vmatprep.subr.mxu0 0.0
    %851 = vmatpush2.msra.mxu0 0.0
    %852 = vmatprep.subr.mxu0 0.0
    %853 = vmatpush2.msra.mxu0 0.0
    %854 = vmatprep.subr.mxu0 0.0
    %855 = vmatpush2.msra.mxu0 0.0
    %856 = vmatprep.subr.mxu0 0.0
    %857 = vmatpush2.msra.mxu0 0.0
    %858 = vmatprep.subr.mxu0 0.0
    %859 = vmatpush2.msra.mxu0 0.0
    %860 = vmatprep.subr.mxu0 0.0
    %861 = vmatpush2.msra.mxu0 0.0
    %862 = vmatprep.subr.mxu0 0.0
    %863 = vmatpush2.msra.mxu0 0.0
    %864 = vmatprep.subr.mxu0 0.0
    %865 = vmatpush2.msra.mxu0 0.0
    %866 = vmatprep.mubr.f32.mxu0 0.0
    %867 = vmatmul.mubr.f32.gmra.mxu0 %v800
    %v868 = vpop.f32.mrf.mxu0
    %v869 = vadd.f32 %v164, %v868
    %v870 = vpop.f32.mrf.mxu0
    %871 = vdwg.mxu0
    %v872 = vtanh.pop %v869
    %v873 = vxor.u32 %v869, 2147483648
    %v874 = vmul.f32 %v873, 1.442695
    %v875 = vpow.pop %v874
    %v876 = vadd.f32 %v875, 1.0
    %v877 = vrcp.pop %v876
    %v878 = vmul.f32 1.0, %v877
    %v879 = vsel %vm28, %v872, %v878
    %v880 = vmul.f32 %v879, %v679
    %882 = vrot.lane.b32.xlu0 %v879, 64
    %v883 = vpop.permute.xlu0 %882
    %v885 = vmul.f32 %v879, %v883
    %887 = vrot.lane.b32.xlu0 %v885, 32
    %v888 = vpop.permute.xlu0 %887
    %v890 = vadd.f32 %v880, %v888
    %v891 = vtanh.pop %v890
    %893 = vrot.lane.b32.xlu0 %v891, 64
    %v894 = vpop.permute.xlu0 %893
    %v896 = vmul.f32 %v879, %v894
    %s897 = scalar_lea.vmem %s0, 8
    %v898 = vld [vmem:[%s897] sm:$0x3]
    %899 = vrot.lane.b32.xlu0 %v789, 64
    %v900 = vpop.permute.xlu0 %899
    %v902 = vsel %vm30, %v898, %v900
    %v904 = vsel %vm47, %v902, 0
    %906 = vmatprep.subr.mxu0 0.0
    %907 = vmatpush1.msra.mxu0 0.0
    %908 = vmatprep.subr.mxu0 0.0
    %909 = vmatpush1.msra.mxu0 0.0
    %910 = vmatprep.subr.mxu0 0.0
    %911 = vmatpush1.msra.mxu0 0.0
    %912 = vmatprep.subr.mxu0 0.0
    %913 = vmatpush1.msra.mxu0 0.0
    %914 = vmatprep.subr.mxu0 0.0
    %915 = vmatpush1.msra.mxu0 0.0
    %916 = vmatprep.subr.mxu0 0.0
    %917 = vmatpush1.msra.mxu0 0.0
    %918 = vmatprep.subr.mxu0 0.0
    %919 = vmatpush1.msra.mxu0 0.0
    %920 = vmatprep.subr.mxu0 0.0
    %921 = vmatpush1.msra.mxu0 0.0
    %922 = vmatprep.subr.mxu0 0.0
    %923 = vmatpush1.msra.mxu0 %v39
    %924 = vmatprep.subr.mxu0 0.0
    %925 = vmatpush1.msra.mxu0 %v38
    %926 = vmatprep.subr.mxu0 0.0
    %927 = vmatpush1.msra.mxu0 %v37
    %928 = vmatprep.subr.mxu0 0.0
    %929 = vmatpush1.msra.mxu0 %v36
    %930 = vmatprep.subr.mxu0 0.0
    %931 = vmatpush1.msra.mxu0 %v35
    %932 = vmatprep.subr.mxu0 0.0
    %933 = vmatpush1.msra.mxu0 %v34
    %934 = vmatprep.subr.mxu0 0.0
    %935 = vmatpush1.msra.mxu0 %v33
    %936 = vmatprep.subr.mxu0 0.0
    %937 = vmatpush1.msra.mxu0 %v32
    %938 = vmatprep.subr.mxu0 0.0
    %939 = vmatpush2.msra.mxu0 0.0
    %940 = vmatprep.subr.mxu0 0.0
    %941 = vmatpush2.msra.mxu0 0.0
    %942 = vmatprep.subr.mxu0 0.0
    %943 = vmatpush2.msra.mxu0 0.0
    %944 = vmatprep.subr.mxu0 0.0
    %945 = vmatpush2.msra.mxu0 0.0
    %946 = vmatprep.subr.mxu0 0.0
    %947 = vmatpush2.msra.mxu0 0.0
    %948 = vmatprep.subr.mxu0 0.0
    %949 = vmatpush2.msra.mxu0 0.0
    %950 = vmatprep.subr.mxu0 0.0
    %951 = vmatpush2.msra.mxu0 0.0
    %952 = vmatprep.subr.mxu0 0.0
    %953 = vmatpush2.msra.mxu0 0.0
    %954 = vmatprep.subr.mxu0 0.0
    %955 = vmatpush2.msra.mxu0 0.0
    %956 = vmatprep.subr.mxu0 0.0
    %957 = vmatpush2.msra.mxu0 0.0
    %958 = vmatprep.subr.mxu0 0.0
    %959 = vmatpush2.msra.mxu0 0.0
    %960 = vmatprep.subr.mxu0 0.0
    %961 = vmatpush2.msra.mxu0 0.0
    %962 = vmatprep.subr.mxu0 0.0
    %963 = vmatpush2.msra.mxu0 0.0
    %964 = vmatprep.subr.mxu0 0.0
    %965 = vmatpush2.msra.mxu0 0.0
    %966 = vmatprep.subr.mxu0 0.0
    %967 = vmatpush2.msra.mxu0 0.0
    %968 = vmatprep.subr.mxu0 0.0
    %969 = vmatpush2.msra.mxu0 0.0
    %970 = vmatprep.mubr.f32.mxu0 0.0
    %971 = vmatmul.mubr.f32.gmra.mxu0 %v904
    %v972 = vpop.f32.mrf.mxu0
    %v973 = vadd.f32 %v45, %v972
    %v974 = vpop.f32.mrf.mxu0
    %975 = vdwg.mxu0
    %v976 = vtanh.pop %v973
    %v977 = vxor.u32 %v973, 2147483648
    %v978 = vmul.f32 %v977, 1.442695
    %v979 = vpow.pop %v978
    %v980 = vadd.f32 %v979, 1.0
    %v981 = vrcp.pop %v980
    %v982 = vmul.f32 1.0, %v981
    %v983 = vsel %vm28, %v976, %v982
    %v984 = vmul.f32 %v983, %v783
    %986 = vrot.lane.b32.xlu0 %v983, 64
    %v987 = vpop.permute.xlu0 %986
    %v989 = vmul.f32 %v983, %v987
    %991 = vrot.lane.b32.xlu0 %v989, 32
    %v992 = vpop.permute.xlu0 %991
    %v994 = vadd.f32 %v984, %v992
    %v995 = vtanh.pop %v994
    %997 = vrot.lane.b32.xlu0 %v995, 64
    %v998 = vpop.permute.xlu0 %997
    %v1000 = vmul.f32 %v983, %v998
    %1002 = vrot.lane.b32.xlu0 %v1000, 32
    %v1003 = vpop.permute.xlu0 %1002
    %1006 = vrot.lane.b32.xlu0 %v896, 64
    %v1007 = vpop.permute.xlu0 %1006
    %v1009 = vsel %vm30, %v1003, %v1007
    %v1011 = vsel %vm47, %v1009, 0
    %1013 = vmatprep.subr.mxu0 0.0
    %1014 = vmatpush1.msra.mxu0 0.0
    %1015 = vmatprep.subr.mxu0 0.0
    %1016 = vmatpush1.msra.mxu0 0.0
    %1017 = vmatprep.subr.mxu0 0.0
    %1018 = vmatpush1.msra.mxu0 0.0
    %1019 = vmatprep.subr.mxu0 0.0
    %1020 = vmatpush1.msra.mxu0 0.0
    %1021 = vmatprep.subr.mxu0 0.0
    %1022 = vmatpush1.msra.mxu0 0.0
    %1023 = vmatprep.subr.mxu0 0.0
    %1024 = vmatpush1.msra.mxu0 0.0
    %1025 = vmatprep.subr.mxu0 0.0
    %1026 = vmatpush1.msra.mxu0 0.0
    %1027 = vmatprep.subr.mxu0 0.0
    %1028 = vmatpush1.msra.mxu0 0.0
    %1029 = vmatprep.subr.mxu0 0.0
    %1030 = vmatpush1.msra.mxu0 %v158
    %1031 = vmatprep.subr.mxu0 0.0
    %1032 = vmatpush1.msra.mxu0 %v157
    %1033 = vmatprep.subr.mxu0 0.0
    %1034 = vmatpush1.msra.mxu0 %v156
    %1035 = vmatprep.subr.mxu0 0.0
    %1036 = vmatpush1.msra.mxu0 %v155
    %1037 = vmatprep.subr.mxu0 0.0
    %1038 = vmatpush1.msra.mxu0 %v154
    %1039 = vmatprep.subr.mxu0 0.0
    %1040 = vmatpush1.msra.mxu0 %v153
    %1041 = vmatprep.subr.mxu0 0.0
    %1042 = vmatpush1.msra.mxu0 %v152
    %1043 = vmatprep.subr.mxu0 0.0
    %1044 = vmatpush1.msra.mxu0 %v151
    %1045 = vmatprep.subr.mxu0 0.0
    %1046 = vmatpush2.msra.mxu0 0.0
    %1047 = vmatprep.subr.mxu0 0.0
    %1048 = vmatpush2.msra.mxu0 0.0
    %1049 = vmatprep.subr.mxu0 0.0
    %1050 = vmatpush2.msra.mxu0 0.0
    %1051 = vmatprep.subr.mxu0 0.0
    %1052 = vmatpush2.msra.mxu0 0.0
    %1053 = vmatprep.subr.mxu0 0.0
    %1054 = vmatpush2.msra.mxu0 0.0
    %1055 = vmatprep.subr.mxu0 0.0
    %1056 = vmatpush2.msra.mxu0 0.0
    %1057 = vmatprep.subr.mxu0 0.0
    %1058 = vmatpush2.msra.mxu0 0.0
    %1059 = vmatprep.subr.mxu0 0.0
    %1060 = vmatpush2.msra.mxu0 0.0
    %1061 = vmatprep.subr.mxu0 0.0
    %1062 = vmatpush2.msra.mxu0 0.0
    %1063 = vmatprep.subr.mxu0 0.0
    %1064 = vmatpush2.msra.mxu0 0.0
    %1065 = vmatprep.subr.mxu0 0.0
    %1066 = vmatpush2.msra.mxu0 0.0
    %1067 = vmatprep.subr.mxu0 0.0
    %1068 = vmatpush2.msra.mxu0 0.0
    %1069 = vmatprep.subr.mxu0 0.0
    %1070 = vmatpush2.msra.mxu0 0.0
    %1071 = vmatprep.subr.mxu0 0.0
    %1072 = vmatpush2.msra.mxu0 0.0
    %1073 = vmatprep.subr.mxu0 0.0
    %1074 = vmatpush2.msra.mxu0 0.0
    %1075 = vmatprep.subr.mxu0 0.0
    %1076 = vmatpush2.msra.mxu0 0.0
    %1077 = vmatprep.mubr.f32.mxu0 0.0
    %1078 = vmatmul.mubr.f32.gmra.mxu0 %v1011
    %v1079 = vpop.f32.mrf.mxu0
    %v1080 = vadd.f32 %v164, %v1079
    %v1081 = vpop.f32.mrf.mxu0
    %1082 = vdwg.mxu0
    %v1083 = vtanh.pop %v1080
    %v1084 = vxor.u32 %v1080, 2147483648
    %v1085 = vmul.f32 %v1084, 1.442695
    %v1086 = vpow.pop %v1085
    %v1087 = vadd.f32 %v1086, 1.0
    %v1088 = vrcp.pop %v1087
    %v1089 = vmul.f32 1.0, %v1088
    %v1090 = vsel %vm28, %v1083, %v1089
    %v1091 = vmul.f32 %v1090, %v890
    %1093 = vrot.lane.b32.xlu0 %v1090, 64
    %v1094 = vpop.permute.xlu0 %1093
    %v1096 = vmul.f32 %v1090, %v1094
    %1098 = vrot.lane.b32.xlu0 %v1096, 32
    %v1099 = vpop.permute.xlu0 %1098
    %v1101 = vadd.f32 %v1091, %v1099
    %v1102 = vtanh.pop %v1101
    %1104 = vrot.lane.b32.xlu0 %v1102, 64
    %v1105 = vpop.permute.xlu0 %1104
    %v1107 = vmul.f32 %v1090, %v1105
    %s1108 = scalar_lea.vmem %s0, 10
    %v1109 = vld [vmem:[%s1108] sm:$0x3]
    %1110 = vrot.lane.b32.xlu0 %v1000, 64
    %v1111 = vpop.permute.xlu0 %1110
    %v1113 = vsel %vm30, %v1109, %v1111
    %v1115 = vsel %vm47, %v1113, 0
    %1117 = vmatprep.subr.mxu0 0.0
    %1118 = vmatpush1.msra.mxu0 0.0
    %1119 = vmatprep.subr.mxu0 0.0
    %1120 = vmatpush1.msra.mxu0 0.0
    %1121 = vmatprep.subr.mxu0 0.0
    %1122 = vmatpush1.msra.mxu0 0.0
    %1123 = vmatprep.subr.mxu0 0.0
    %1124 = vmatpush1.msra.mxu0 0.0
    %1125 = vmatprep.subr.mxu0 0.0
    %1126 = vmatpush1.msra.mxu0 0.0
    %1127 = vmatprep.subr.mxu0 0.0
    %1128 = vmatpush1.msra.mxu0 0.0
    %1129 = vmatprep.subr.mxu0 0.0
    %1130 = vmatpush1.msra.mxu0 0.0
    %1131 = vmatprep.subr.mxu0 0.0
    %1132 = vmatpush1.msra.mxu0 0.0
    %1133 = vmatprep.subr.mxu0 0.0
    %1134 = vmatpush1.msra.mxu0 %v39
    %1135 = vmatprep.subr.mxu0 0.0
    %1136 = vmatpush1.msra.mxu0 %v38
    %1137 = vmatprep.subr.mxu0 0.0
    %1138 = vmatpush1.msra.mxu0 %v37
    %1139 = vmatprep.subr.mxu0 0.0
    %1140 = vmatpush1.msra.mxu0 %v36
    %1141 = vmatprep.subr.mxu0 0.0
    %1142 = vmatpush1.msra.mxu0 %v35
    %1143 = vmatprep.subr.mxu0 0.0
    %1144 = vmatpush1.msra.mxu0 %v34
    %1145 = vmatprep.subr.mxu0 0.0
    %1146 = vmatpush1.msra.mxu0 %v33
    %1147 = vmatprep.subr.mxu0 0.0
    %1148 = vmatpush1.msra.mxu0 %v32
    %1149 = vmatprep.subr.mxu0 0.0
    %1150 = vmatpush2.msra.mxu0 0.0
    %1151 = vmatprep.subr.mxu0 0.0
    %1152 = vmatpush2.msra.mxu0 0.0
    %1153 = vmatprep.subr.mxu0 0.0
    %1154 = vmatpush2.msra.mxu0 0.0
    %1155 = vmatprep.subr.mxu0 0.0
    %1156 = vmatpush2.msra.mxu0 0.0
    %1157 = vmatprep.subr.mxu0 0.0
    %1158 = vmatpush2.msra.mxu0 0.0
    %1159 = vmatprep.subr.mxu0 0.0
    %1160 = vmatpush2.msra.mxu0 0.0
    %1161 = vmatprep.subr.mxu0 0.0
    %1162 = vmatpush2.msra.mxu0 0.0
    %1163 = vmatprep.subr.mxu0 0.0
    %1164 = vmatpush2.msra.mxu0 0.0
    %1165 = vmatprep.subr.mxu0 0.0
    %1166 = vmatpush2.msra.mxu0 0.0
    %1167 = vmatprep.subr.mxu0 0.0
    %1168 = vmatpush2.msra.mxu0 0.0
    %1169 = vmatprep.subr.mxu0 0.0
    %1170 = vmatpush2.msra.mxu0 0.0
    %1171 = vmatprep.subr.mxu0 0.0
    %1172 = vmatpush2.msra.mxu0 0.0
    %1173 = vmatprep.subr.mxu0 0.0
    %1174 = vmatpush2.msra.mxu0 0.0
    %1175 = vmatprep.subr.mxu0 0.0
    %1176 = vmatpush2.msra.mxu0 0.0
    %1177 = vmatprep.subr.mxu0 0.0
    %1178 = vmatpush2.msra.mxu0 0.0
    %1179 = vmatprep.subr.mxu0 0.0
    %1180 = vmatpush2.msra.mxu0 0.0
    %1181 = vmatprep.mubr.f32.mxu0 0.0
    %1182 = vmatmul.mubr.f32.gmra.mxu0 %v1115
    %v1183 = vpop.f32.mrf.mxu0
    %v1184 = vadd.f32 %v45, %v1183
    %v1185 = vpop.f32.mrf.mxu0
    %1186 = vdwg.mxu0
    %v1187 = vtanh.pop %v1184
    %v1188 = vxor.u32 %v1184, 2147483648
    %v1189 = vmul.f32 %v1188, 1.442695
    %v1190 = vpow.pop %v1189
    %v1191 = vadd.f32 %v1190, 1.0
    %v1192 = vrcp.pop %v1191
    %v1193 = vmul.f32 1.0, %v1192
    %v1194 = vsel %vm28, %v1187, %v1193
    %v1195 = vmul.f32 %v1194, %v994
    %1197 = vrot.lane.b32.xlu0 %v1194, 64
    %v1198 = vpop.permute.xlu0 %1197
    %v1200 = vmul.f32 %v1194, %v1198
    %1202 = vrot.lane.b32.xlu0 %v1200, 32
    %v1203 = vpop.permute.xlu0 %1202
    %v1205 = vadd.f32 %v1195, %v1203
    %v1206 = vtanh.pop %v1205
    %1208 = vrot.lane.b32.xlu0 %v1206, 64
    %v1209 = vpop.permute.xlu0 %1208
    %v1211 = vmul.f32 %v1194, %v1209
    %1213 = vrot.lane.b32.xlu0 %v1211, 32
    %v1214 = vpop.permute.xlu0 %1213
    %1217 = vrot.lane.b32.xlu0 %v1107, 64
    %v1218 = vpop.permute.xlu0 %1217
    %v1220 = vsel %vm30, %v1214, %v1218
    %v1222 = vsel %vm47, %v1220, 0
    %1224 = vmatprep.subr.mxu0 0.0
    %1225 = vmatpush1.msra.mxu0 0.0
    %1226 = vmatprep.subr.mxu0 0.0
    %1227 = vmatpush1.msra.mxu0 0.0
    %1228 = vmatprep.subr.mxu0 0.0
    %1229 = vmatpush1.msra.mxu0 0.0
    %1230 = vmatprep.subr.mxu0 0.0
    %1231 = vmatpush1.msra.mxu0 0.0
    %1232 = vmatprep.subr.mxu0 0.0
    %1233 = vmatpush1.msra.mxu0 0.0
    %1234 = vmatprep.subr.mxu0 0.0
    %1235 = vmatpush1.msra.mxu0 0.0
    %1236 = vmatprep.subr.mxu0 0.0
    %1237 = vmatpush1.msra.mxu0 0.0
    %1238 = vmatprep.subr.mxu0 0.0
    %1239 = vmatpush1.msra.mxu0 0.0
    %1240 = vmatprep.subr.mxu0 0.0
    %1241 = vmatpush1.msra.mxu0 %v158
    %1242 = vmatprep.subr.mxu0 0.0
    %1243 = vmatpush1.msra.mxu0 %v157
    %1244 = vmatprep.subr.mxu0 0.0
    %1245 = vmatpush1.msra.mxu0 %v156
    %1246 = vmatprep.subr.mxu0 0.0
    %1247 = vmatpush1.msra.mxu0 %v155
    %1248 = vmatprep.subr.mxu0 0.0
    %1249 = vmatpush1.msra.mxu0 %v154
    %1250 = vmatprep.subr.mxu0 0.0
    %1251 = vmatpush1.msra.mxu0 %v153
    %1252 = vmatprep.subr.mxu0 0.0
    %1253 = vmatpush1.msra.mxu0 %v152
    %1254 = vmatprep.subr.mxu0 0.0
    %1255 = vmatpush1.msra.mxu0 %v151
    %1256 = vmatprep.subr.mxu0 0.0
    %1257 = vmatpush2.msra.mxu0 0.0
    %1258 = vmatprep.subr.mxu0 0.0
    %1259 = vmatpush2.msra.mxu0 0.0
    %1260 = vmatprep.subr.mxu0 0.0
    %1261 = vmatpush2.msra.mxu0 0.0
    %1262 = vmatprep.subr.mxu0 0.0
    %1263 = vmatpush2.msra.mxu0 0.0
    %1264 = vmatprep.subr.mxu0 0.0
    %1265 = vmatpush2.msra.mxu0 0.0
    %1266 = vmatprep.subr.mxu0 0.0
    %1267 = vmatpush2.msra.mxu0 0.0
    %1268 = vmatprep.subr.mxu0 0.0
    %1269 = vmatpush2.msra.mxu0 0.0
    %1270 = vmatprep.subr.mxu0 0.0
    %1271 = vmatpush2.msra.mxu0 0.0
    %1272 = vmatprep.subr.mxu0 0.0
    %1273 = vmatpush2.msra.mxu0 0.0
    %1274 = vmatprep.subr.mxu0 0.0
    %1275 = vmatpush2.msra.mxu0 0.0
    %1276 = vmatprep.subr.mxu0 0.0
    %1277 = vmatpush2.msra.mxu0 0.0
    %1278 = vmatprep.subr.mxu0 0.0
    %1279 = vmatpush2.msra.mxu0 0.0
    %1280 = vmatprep.subr.mxu0 0.0
    %1281 = vmatpush2.msra.mxu0 0.0
    %1282 = vmatprep.subr.mxu0 0.0
    %1283 = vmatpush2.msra.mxu0 0.0
    %1284 = vmatprep.subr.mxu0 0.0
    %1285 = vmatpush2.msra.mxu0 0.0
    %1286 = vmatprep.subr.mxu0 0.0
    %1287 = vmatpush2.msra.mxu0 0.0
    %1288 = vmatprep.mubr.f32.mxu0 0.0
    %1289 = vmatmul.mubr.f32.gmra.mxu0 %v1222
    %v1290 = vpop.f32.mrf.mxu0
    %v1291 = vadd.f32 %v164, %v1290
    %v1292 = vpop.f32.mrf.mxu0
    %1293 = vdwg.mxu0
    %v1294 = vtanh.pop %v1291
    %v1295 = vxor.u32 %v1291, 2147483648
    %v1296 = vmul.f32 %v1295, 1.442695
    %v1297 = vpow.pop %v1296
    %v1298 = vadd.f32 %v1297, 1.0
    %v1299 = vrcp.pop %v1298
    %v1300 = vmul.f32 1.0, %v1299
    %v1301 = vsel %vm28, %v1294, %v1300
    %v1302 = vmul.f32 %v1301, %v1101
    %1304 = vrot.lane.b32.xlu0 %v1301, 64
    %v1305 = vpop.permute.xlu0 %1304
    %v1307 = vmul.f32 %v1301, %v1305
    %1309 = vrot.lane.b32.xlu0 %v1307, 32
    %v1310 = vpop.permute.xlu0 %1309
    %v1312 = vadd.f32 %v1302, %v1310
    %v1313 = vtanh.pop %v1312
    %1315 = vrot.lane.b32.xlu0 %v1313, 64
    %v1316 = vpop.permute.xlu0 %1315
    %v1318 = vmul.f32 %v1301, %v1316
    %s1319 = scalar_lea.vmem %s0, 12
    %v1320 = vld [vmem:[%s1319] sm:$0x3]
    %1321 = vrot.lane.b32.xlu0 %v1211, 64
    %v1322 = vpop.permute.xlu0 %1321
    %v1324 = vsel %vm30, %v1320, %v1322
    %v1326 = vsel %vm47, %v1324, 0
    %1328 = vmatprep.subr.mxu0 0.0
    %1329 = vmatpush1.msra.mxu0 0.0
    %1330 = vmatprep.subr.mxu0 0.0
    %1331 = vmatpush1.msra.mxu0 0.0
    %1332 = vmatprep.subr.mxu0 0.0
    %1333 = vmatpush1.msra.mxu0 0.0
    %1334 = vmatprep.subr.mxu0 0.0
    %1335 = vmatpush1.msra.mxu0 0.0
    %1336 = vmatprep.subr.mxu0 0.0
    %1337 = vmatpush1.msra.mxu0 0.0
    %1338 = vmatprep.subr.mxu0 0.0
    %1339 = vmatpush1.msra.mxu0 0.0
    %1340 = vmatprep.subr.mxu0 0.0
    %1341 = vmatpush1.msra.mxu0 0.0
    %1342 = vmatprep.subr.mxu0 0.0
    %1343 = vmatpush1.msra.mxu0 0.0
    %1344 = vmatprep.subr.mxu0 0.0
    %1345 = vmatpush1.msra.mxu0 %v39
    %1346 = vmatprep.subr.mxu0 0.0
    %1347 = vmatpush1.msra.mxu0 %v38
    %1348 = vmatprep.subr.mxu0 0.0
    %1349 = vmatpush1.msra.mxu0 %v37
    %1350 = vmatprep.subr.mxu0 0.0
    %1351 = vmatpush1.msra.mxu0 %v36
    %1352 = vmatprep.subr.mxu0 0.0
    %1353 = vmatpush1.msra.mxu0 %v35
    %1354 = vmatprep.subr.mxu0 0.0
    %1355 = vmatpush1.msra.mxu0 %v34
    %1356 = vmatprep.subr.mxu0 0.0
    %1357 = vmatpush1.msra.mxu0 %v33
    %1358 = vmatprep.subr.mxu0 0.0
    %1359 = vmatpush1.msra.mxu0 %v32
    %1360 = vmatprep.subr.mxu0 0.0
    %1361 = vmatpush2.msra.mxu0 0.0
    %1362 = vmatprep.subr.mxu0 0.0
    %1363 = vmatpush2.msra.mxu0 0.0
    %1364 = vmatprep.subr.mxu0 0.0
    %1365 = vmatpush2.msra.mxu0 0.0
    %1366 = vmatprep.subr.mxu0 0.0
    %1367 = vmatpush2.msra.mxu0 0.0
    %1368 = vmatprep.subr.mxu0 0.0
    %1369 = vmatpush2.msra.mxu0 0.0
    %1370 = vmatprep.subr.mxu0 0.0
    %1371 = vmatpush2.msra.mxu0 0.0
    %1372 = vmatprep.subr.mxu0 0.0
    %1373 = vmatpush2.msra.mxu0 0.0
    %1374 = vmatprep.subr.mxu0 0.0
    %1375 = vmatpush2.msra.mxu0 0.0
    %1376 = vmatprep.subr.mxu0 0.0
    %1377 = vmatpush2.msra.mxu0 0.0
    %1378 = vmatprep.subr.mxu0 0.0
    %1379 = vmatpush2.msra.mxu0 0.0
    %1380 = vmatprep.subr.mxu0 0.0
    %1381 = vmatpush2.msra.mxu0 0.0
    %1382 = vmatprep.subr.mxu0 0.0
    %1383 = vmatpush2.msra.mxu0 0.0
    %1384 = vmatprep.subr.mxu0 0.0
    %1385 = vmatpush2.msra.mxu0 0.0
    %1386 = vmatprep.subr.mxu0 0.0
    %1387 = vmatpush2.msra.mxu0 0.0
    %1388 = vmatprep.subr.mxu0 0.0
    %1389 = vmatpush2.msra.mxu0 0.0
    %1390 = vmatprep.subr.mxu0 0.0
    %1391 = vmatpush2.msra.mxu0 0.0
    %1392 = vmatprep.mubr.f32.mxu0 0.0
    %1393 = vmatmul.mubr.f32.gmra.mxu0 %v1326
    %v1394 = vpop.f32.mrf.mxu0
    %v1395 = vadd.f32 %v45, %v1394
    %v1396 = vpop.f32.mrf.mxu0
    %1397 = vdwg.mxu0
    %v1398 = vtanh.pop %v1395
    %v1399 = vxor.u32 %v1395, 2147483648
    %v1400 = vmul.f32 %v1399, 1.442695
    %v1401 = vpow.pop %v1400
    %v1402 = vadd.f32 %v1401, 1.0
    %v1403 = vrcp.pop %v1402
    %v1404 = vmul.f32 1.0, %v1403
    %v1405 = vsel %vm28, %v1398, %v1404
    %v1406 = vmul.f32 %v1405, %v1205
    %1408 = vrot.lane.b32.xlu0 %v1405, 64
    %v1409 = vpop.permute.xlu0 %1408
    %v1411 = vmul.f32 %v1405, %v1409
    %1413 = vrot.lane.b32.xlu0 %v1411, 32
    %v1414 = vpop.permute.xlu0 %1413
    %v1416 = vadd.f32 %v1406, %v1414
    %v1417 = vtanh.pop %v1416
    %1419 = vrot.lane.b32.xlu0 %v1417, 64
    %v1420 = vpop.permute.xlu0 %1419
    %v1422 = vmul.f32 %v1405, %v1420
    %1424 = vrot.lane.b32.xlu0 %v1422, 32
    %v1425 = vpop.permute.xlu0 %1424
    %1428 = vrot.lane.b32.xlu0 %v1318, 64
    %v1429 = vpop.permute.xlu0 %1428
    %v1431 = vsel %vm30, %v1425, %v1429
    %v1433 = vsel %vm47, %v1431, 0
    %1435 = vmatprep.subr.mxu0 0.0
    %1436 = vmatpush1.msra.mxu0 0.0
    %1437 = vmatprep.subr.mxu0 0.0
    %1438 = vmatpush1.msra.mxu0 0.0
    %1439 = vmatprep.subr.mxu0 0.0
    %1440 = vmatpush1.msra.mxu0 0.0
    %1441 = vmatprep.subr.mxu0 0.0
    %1442 = vmatpush1.msra.mxu0 0.0
    %1443 = vmatprep.subr.mxu0 0.0
    %1444 = vmatpush1.msra.mxu0 0.0
    %1445 = vmatprep.subr.mxu0 0.0
    %1446 = vmatpush1.msra.mxu0 0.0
    %1447 = vmatprep.subr.mxu0 0.0
    %1448 = vmatpush1.msra.mxu0 0.0
    %1449 = vmatprep.subr.mxu0 0.0
    %1450 = vmatpush1.msra.mxu0 0.0
    %1451 = vmatprep.subr.mxu0 0.0
    %1452 = vmatpush1.msra.mxu0 %v158
    %1453 = vmatprep.subr.mxu0 0.0
    %1454 = vmatpush1.msra.mxu0 %v157
    %1455 = vmatprep.subr.mxu0 0.0
    %1456 = vmatpush1.msra.mxu0 %v156
    %1457 = vmatprep.subr.mxu0 0.0
    %1458 = vmatpush1.msra.mxu0 %v155
    %1459 = vmatprep.subr.mxu0 0.0
    %1460 = vmatpush1.msra.mxu0 %v154
    %1461 = vmatprep.subr.mxu0 0.0
    %1462 = vmatpush1.msra.mxu0 %v153
    %1463 = vmatprep.subr.mxu0 0.0
    %1464 = vmatpush1.msra.mxu0 %v152
    %1465 = vmatprep.subr.mxu0 0.0
    %1466 = vmatpush1.msra.mxu0 %v151
    %1467 = vmatprep.subr.mxu0 0.0
    %1468 = vmatpush2.msra.mxu0 0.0
    %1469 = vmatprep.subr.mxu0 0.0
    %1470 = vmatpush2.msra.mxu0 0.0
    %1471 = vmatprep.subr.mxu0 0.0
    %1472 = vmatpush2.msra.mxu0 0.0
    %1473 = vmatprep.subr.mxu0 0.0
    %1474 = vmatpush2.msra.mxu0 0.0
    %1475 = vmatprep.subr.mxu0 0.0
    %1476 = vmatpush2.msra.mxu0 0.0
    %1477 = vmatprep.subr.mxu0 0.0
    %1478 = vmatpush2.msra.mxu0 0.0
    %1479 = vmatprep.subr.mxu0 0.0
    %1480 = vmatpush2.msra.mxu0 0.0
    %1481 = vmatprep.subr.mxu0 0.0
    %1482 = vmatpush2.msra.mxu0 0.0
    %1483 = vmatprep.subr.mxu0 0.0
    %1484 = vmatpush2.msra.mxu0 0.0
    %1485 = vmatprep.subr.mxu0 0.0
    %1486 = vmatpush2.msra.mxu0 0.0
    %1487 = vmatprep.subr.mxu0 0.0
    %1488 = vmatpush2.msra.mxu0 0.0
    %1489 = vmatprep.subr.mxu0 0.0
    %1490 = vmatpush2.msra.mxu0 0.0
    %1491 = vmatprep.subr.mxu0 0.0
    %1492 = vmatpush2.msra.mxu0 0.0
    %1493 = vmatprep.subr.mxu0 0.0
    %1494 = vmatpush2.msra.mxu0 0.0
    %1495 = vmatprep.subr.mxu0 0.0
    %1496 = vmatpush2.msra.mxu0 0.0
    %1497 = vmatprep.subr.mxu0 0.0
    %1498 = vmatpush2.msra.mxu0 0.0
    %1499 = vmatprep.mubr.f32.mxu0 0.0
    %1500 = vmatmul.mubr.f32.gmra.mxu0 %v1433
    %v1501 = vpop.f32.mrf.mxu0
    %v1502 = vadd.f32 %v164, %v1501
    %v1503 = vpop.f32.mrf.mxu0
    %1504 = vdwg.mxu0
    %v1505 = vtanh.pop %v1502
    %v1506 = vxor.u32 %v1502, 2147483648
    %v1507 = vmul.f32 %v1506, 1.442695
    %v1508 = vpow.pop %v1507
    %v1509 = vadd.f32 %v1508, 1.0
    %v1510 = vrcp.pop %v1509
    %v1511 = vmul.f32 1.0, %v1510
    %v1512 = vsel %vm28, %v1505, %v1511
    %v1513 = vmul.f32 %v1512, %v1312
    %1515 = vrot.lane.b32.xlu0 %v1512, 64
    %v1516 = vpop.permute.xlu0 %1515
    %v1518 = vmul.f32 %v1512, %v1516
    %1520 = vrot.lane.b32.xlu0 %v1518, 32
    %v1521 = vpop.permute.xlu0 %1520
    %v1523 = vadd.f32 %v1513, %v1521
    %v1524 = vtanh.pop %v1523
    %1526 = vrot.lane.b32.xlu0 %v1524, 64
    %v1527 = vpop.permute.xlu0 %1526
    %v1529 = vmul.f32 %v1512, %v1527
    %s1530 = scalar_lea.vmem %s0, 14
    %v1531 = vld [vmem:[%s1530] sm:$0x3]
    %1532 = vrot.lane.b32.xlu0 %v1422, 64
    %v1533 = vpop.permute.xlu0 %1532
    %v1535 = vsel %vm30, %v1531, %v1533
    %v1537 = vsel %vm47, %v1535, 0
    %1539 = vmatprep.subr.mxu0 0.0
    %1540 = vmatpush1.msra.mxu0 0.0
    %1541 = vmatprep.subr.mxu0 0.0
    %1542 = vmatpush1.msra.mxu0 0.0
    %1543 = vmatprep.subr.mxu0 0.0
    %1544 = vmatpush1.msra.mxu0 0.0
    %1545 = vmatprep.subr.mxu0 0.0
    %1546 = vmatpush1.msra.mxu0 0.0
    %1547 = vmatprep.subr.mxu0 0.0
    %1548 = vmatpush1.msra.mxu0 0.0
    %1549 = vmatprep.subr.mxu0 0.0
    %1550 = vmatpush1.msra.mxu0 0.0
    %1551 = vmatprep.subr.mxu0 0.0
    %1552 = vmatpush1.msra.mxu0 0.0
    %1553 = vmatprep.subr.mxu0 0.0
    %1554 = vmatpush1.msra.mxu0 0.0
    %1555 = vmatprep.subr.mxu0 0.0
    %1556 = vmatpush1.msra.mxu0 %v39
    %1557 = vmatprep.subr.mxu0 0.0
    %1558 = vmatpush1.msra.mxu0 %v38
    %1559 = vmatprep.subr.mxu0 0.0
    %1560 = vmatpush1.msra.mxu0 %v37
    %1561 = vmatprep.subr.mxu0 0.0
    %1562 = vmatpush1.msra.mxu0 %v36
    %1563 = vmatprep.subr.mxu0 0.0
    %1564 = vmatpush1.msra.mxu0 %v35
    %1565 = vmatprep.subr.mxu0 0.0
    %1566 = vmatpush1.msra.mxu0 %v34
    %1567 = vmatprep.subr.mxu0 0.0
    %1568 = vmatpush1.msra.mxu0 %v33
    %1569 = vmatprep.subr.mxu0 0.0
    %1570 = vmatpush1.msra.mxu0 %v32
    %1571 = vmatprep.subr.mxu0 0.0
    %1572 = vmatpush2.msra.mxu0 0.0
    %1573 = vmatprep.subr.mxu0 0.0
    %1574 = vmatpush2.msra.mxu0 0.0
    %1575 = vmatprep.subr.mxu0 0.0
    %1576 = vmatpush2.msra.mxu0 0.0
    %1577 = vmatprep.subr.mxu0 0.0
    %1578 = vmatpush2.msra.mxu0 0.0
    %1579 = vmatprep.subr.mxu0 0.0
    %1580 = vmatpush2.msra.mxu0 0.0
    %1581 = vmatprep.subr.mxu0 0.0
    %1582 = vmatpush2.msra.mxu0 0.0
    %1583 = vmatprep.subr.mxu0 0.0
    %1584 = vmatpush2.msra.mxu0 0.0
    %1585 = vmatprep.subr.mxu0 0.0
    %1586 = vmatpush2.msra.mxu0 0.0
    %1587 = vmatprep.subr.mxu0 0.0
    %1588 = vmatpush2.msra.mxu0 0.0
    %1589 = vmatprep.subr.mxu0 0.0
    %1590 = vmatpush2.msra.mxu0 0.0
    %1591 = vmatprep.subr.mxu0 0.0
    %1592 = vmatpush2.msra.mxu0 0.0
    %1593 = vmatprep.subr.mxu0 0.0
    %1594 = vmatpush2.msra.mxu0 0.0
    %1595 = vmatprep.subr.mxu0 0.0
    %1596 = vmatpush2.msra.mxu0 0.0
    %1597 = vmatprep.subr.mxu0 0.0
    %1598 = vmatpush2.msra.mxu0 0.0
    %1599 = vmatprep.subr.mxu0 0.0
    %1600 = vmatpush2.msra.mxu0 0.0
    %1601 = vmatprep.subr.mxu0 0.0
    %1602 = vmatpush2.msra.mxu0 0.0
    %1603 = vmatprep.mubr.f32.mxu0 0.0
    %1604 = vmatmul.mubr.f32.gmra.mxu0 %v1537
    %v1605 = vpop.f32.mrf.mxu0
    %v1606 = vadd.f32 %v45, %v1605
    %v1607 = vpop.f32.mrf.mxu0
    %1608 = vdwg.mxu0
    %v1609 = vtanh.pop %v1606
    %v1610 = vxor.u32 %v1606, 2147483648
    %v1611 = vmul.f32 %v1610, 1.442695
    %v1612 = vpow.pop %v1611
    %v1613 = vadd.f32 %v1612, 1.0
    %v1614 = vrcp.pop %v1613
    %v1615 = vmul.f32 1.0, %v1614
    %v1616 = vsel %vm28, %v1609, %v1615
    %v1617 = vmul.f32 %v1616, %v1416
    %1619 = vrot.lane.b32.xlu0 %v1616, 64
    %v1620 = vpop.permute.xlu0 %1619
    %v1622 = vmul.f32 %v1616, %v1620
    %1624 = vrot.lane.b32.xlu0 %v1622, 32
    %v1625 = vpop.permute.xlu0 %1624
    %v1627 = vadd.f32 %v1617, %v1625
    %v1628 = vtanh.pop %v1627
    %1630 = vrot.lane.b32.xlu0 %v1628, 64
    %v1631 = vpop.permute.xlu0 %1630
    %v1633 = vmul.f32 %v1616, %v1631
    %1635 = vrot.lane.b32.xlu0 %v1633, 32
    %v1636 = vpop.permute.xlu0 %1635
    %1639 = vrot.lane.b32.xlu0 %v1529, 64
    %v1640 = vpop.permute.xlu0 %1639
    %v1642 = vsel %vm30, %v1636, %v1640
    %v1644 = vsel %vm47, %v1642, 0
    %1646 = vmatprep.subr.mxu0 0.0
    %1647 = vmatpush1.msra.mxu0 0.0
    %1648 = vmatprep.subr.mxu0 0.0
    %1649 = vmatpush1.msra.mxu0 0.0
    %1650 = vmatprep.subr.mxu0 0.0
    %1651 = vmatpush1.msra.mxu0 0.0
    %1652 = vmatprep.subr.mxu0 0.0
    %1653 = vmatpush1.msra.mxu0 0.0
    %1654 = vmatprep.subr.mxu0 0.0
    %1655 = vmatpush1.msra.mxu0 0.0
    %1656 = vmatprep.subr.mxu0 0.0
    %1657 = vmatpush1.msra.mxu0 0.0
    %1658 = vmatprep.subr.mxu0 0.0
    %1659 = vmatpush1.msra.mxu0 0.0
    %1660 = vmatprep.subr.mxu0 0.0
    %1661 = vmatpush1.msra.mxu0 0.0
    %1662 = vmatprep.subr.mxu0 0.0
    %1663 = vmatpush1.msra.mxu0 %v158
    %1664 = vmatprep.subr.mxu0 0.0
    %1665 = vmatpush1.msra.mxu0 %v157
    %1666 = vmatprep.subr.mxu0 0.0
    %1667 = vmatpush1.msra.mxu0 %v156
    %1668 = vmatprep.subr.mxu0 0.0
    %1669 = vmatpush1.msra.mxu0 %v155
    %1670 = vmatprep.subr.mxu0 0.0
    %1671 = vmatpush1.msra.mxu0 %v154
    %1672 = vmatprep.subr.mxu0 0.0
    %1673 = vmatpush1.msra.mxu0 %v153
    %1674 = vmatprep.subr.mxu0 0.0
    %1675 = vmatpush1.msra.mxu0 %v152
    %1676 = vmatprep.subr.mxu0 0.0
    %1677 = vmatpush1.msra.mxu0 %v151
    %1678 = vmatprep.subr.mxu0 0.0
    %1679 = vmatpush2.msra.mxu0 0.0
    %1680 = vmatprep.subr.mxu0 0.0
    %1681 = vmatpush2.msra.mxu0 0.0
    %1682 = vmatprep.subr.mxu0 0.0
    %1683 = vmatpush2.msra.mxu0 0.0
    %1684 = vmatprep.subr.mxu0 0.0
    %1685 = vmatpush2.msra.mxu0 0.0
    %1686 = vmatprep.subr.mxu0 0.0
    %1687 = vmatpush2.msra.mxu0 0.0
    %1688 = vmatprep.subr.mxu0 0.0
    %1689 = vmatpush2.msra.mxu0 0.0
    %1690 = vmatprep.subr.mxu0 0.0
    %1691 = vmatpush2.msra.mxu0 0.0
    %1692 = vmatprep.subr.mxu0 0.0
    %1693 = vmatpush2.msra.mxu0 0.0
    %1694 = vmatprep.subr.mxu0 0.0
    %1695 = vmatpush2.msra.mxu0 0.0
    %1696 = vmatprep.subr.mxu0 0.0
    %1697 = vmatpush2.msra.mxu0 0.0
    %1698 = vmatprep.subr.mxu0 0.0
    %1699 = vmatpush2.msra.mxu0 0.0
    %1700 = vmatprep.subr.mxu0 0.0
    %1701 = vmatpush2.msra.mxu0 0.0
    %1702 = vmatprep.subr.mxu0 0.0
    %1703 = vmatpush2.msra.mxu0 0.0
    %1704 = vmatprep.subr.mxu0 0.0
    %1705 = vmatpush2.msra.mxu0 0.0
    %1706 = vmatprep.subr.mxu0 0.0
    %1707 = vmatpush2.msra.mxu0 0.0
    %1708 = vmatprep.subr.mxu0 0.0
    %1709 = vmatpush2.msra.mxu0 0.0
    %1710 = vmatprep.mubr.f32.mxu0 0.0
    %1711 = vmatmul.mubr.f32.gmra.mxu0 %v1644
    %v1712 = vpop.f32.mrf.mxu0
    %v1713 = vadd.f32 %v164, %v1712
    %v1714 = vpop.f32.mrf.mxu0
    %1715 = vdwg.mxu0
    %v1716 = vtanh.pop %v1713
    %v1717 = vxor.u32 %v1713, 2147483648
    %v1718 = vmul.f32 %v1717, 1.442695
    %v1719 = vpow.pop %v1718
    %v1720 = vadd.f32 %v1719, 1.0
    %v1721 = vrcp.pop %v1720
    %v1722 = vmul.f32 1.0, %v1721
    %v1723 = vsel %vm28, %v1716, %v1722
    %v1724 = vmul.f32 %v1723, %v1523
    %1726 = vrot.lane.b32.xlu0 %v1723, 64
    %v1727 = vpop.permute.xlu0 %1726
    %v1729 = vmul.f32 %v1723, %v1727
    %1731 = vrot.lane.b32.xlu0 %v1729, 32
    %v1732 = vpop.permute.xlu0 %1731
    %v1734 = vadd.f32 %v1724, %v1732
    %v1735 = vtanh.pop %v1734
    %1737 = vrot.lane.b32.xlu0 %v1735, 64
    %v1738 = vpop.permute.xlu0 %1737
    %v1740 = vmul.f32 %v1723, %v1738
    %vm1741 = vcmask 254976
    %1742 = vst.msk [vmem:[#allocation2] sm:$0x3] %vm1741, %v1636
    %1744 = vrot.lane.b32.xlu0 %v1740, 32
    %v1745 = vpop.permute.xlu0 %1744
    %s1747 = scalar_lea.vmem [#allocation2], 2
    %1748 = vst.msk [vmem:[%s1747] sm:$0x3] %vm1741, %v1745
    %1750 = vrot.lane.b32.xlu0 %v1627, 96
    %v1751 = vpop.permute.xlu0 %1750
    %1753 = vst.msk [vmem:[#allocation4] sm:$0x3] %vm1741, %v1751
    %1755 = vrot.lane.b32.xlu0 %v1734, 96
    %v1756 = vpop.permute.xlu0 %1755
    %s1758 = scalar_lea.vmem [#allocation4], 2
    %1759 = vst.msk [vmem:[%s1758] sm:$0x3] %vm1741, %v1756
    // Predicated region
    $region22: #{encoder_forward.1} parent=1 // pred_check
      _
    $region23: #{encoder_forward.1} parent=1 // pred_check_branch
      %1761 = sbr.rel (0) target = $region25
    $region24: #{encoder_forward.1} parent=1 // pred_region
      %s1763 = ssub.s32 64, 64
      %1764 = vsyncadd [#allocation3], %s1763
      %s1765 = sshll.u32 [#allocation2], 4
      %s1766 = int_to_ptr.vmem [resolvable:$true] %s1765
      %1771 = dma.vmem_to_hbm [thread:$0]  %s1766, 64, %s5, [#allocation3], 32, 32, 2
    $region25: #{encoder_forward.1} parent=1 // pred_fallthru
      _
    // Predicated region
    $region26: #{encoder_forward.1} parent=1 // pred_check
      _
    $region27: #{encoder_forward.1} parent=1 // pred_check_branch
      %1773 = sbr.rel (0) target = $region29
    $region28: #{encoder_forward.1} parent=1 // pred_region
      %s1775 = ssub.s32 64, 64
      %1776 = vsyncadd [#allocation5], %s1775
      %s1777 = sshll.u32 [#allocation4], 4
      %s1778 = int_to_ptr.vmem [resolvable:$true] %s1777
      %1783 = dma.vmem_to_hbm [thread:$0]  %s1778, 64, %s6, [#allocation5], 32, 32, 2
    $region29: #{encoder_forward.1} parent=1 // pred_fallthru
      _
    // Predicated region
    $region30: #{encoder_forward.1} parent=1 // pred_check
      _
    $region31: #{encoder_forward.1} parent=1 // pred_check_branch
      %1785 = sbr.rel (0) target = $region33
    $region32: #{encoder_forward.1} parent=1 // pred_region
      %1786 = dma.done [#allocation3], 64
    $region33: #{encoder_forward.1} parent=1 // pred_fallthru
      _
    // Predicated region
    $region34: #{encoder_forward.1} parent=1 // pred_check
      _
    $region35: #{encoder_forward.1} parent=1 // pred_check_branch
      %1788 = sbr.rel (0) target = $region37
    $region36: #{encoder_forward.1} parent=1 // pred_region
      %1789 = dma.done [#allocation5], 64
    $region37: #{encoder_forward.1} parent=1 // pred_fallthru
      _
    %1790 = vsyncpa [#allocation3], 1
    %1791 = vsyncpa [#allocation5], 1

</llo_original>
